<compile_context>
chip_gen: v5e
topology: v5e:2x2
jax: 0.10.0
libtpu: 0.0.40
codegen_flags: <defaults>
</compile_context>

<pallas_src>
import functools

import jax
import jax.numpy as jnp
from jax.experimental import pallas as pl
from jax.experimental.pallas import tpu as pltpu


def _round_up(x, m):
    return ((x + m - 1) // m) * m


def _device_kind():
    try:
        return jax.devices()[0].device_kind.lower()
    except Exception:
        return ""


def _vmem_limit_bytes(kind):
    # v7x has 64 MiB of VMEM per TensorCore; v5e/v6e have 128 MiB.
    if "v7" in kind:
        return 40 * 1024 * 1024
    return 48 * 1024 * 1024


def _prefer_tm256(kind):
    # v6e/v7x MXUs are 256-wide; v5e (and earlier) are 128-wide, so tm=128 is
    # already optimal there.
    return not any(v in kind for v in ("v2", "v3", "v4", "v5"))


def _choose_row_tile(n, f_pad, kind, vmem_limit, requested=None):
    """Pick the row tile tm and the padded node count n_pad (= multiple of tm)."""
    if requested is not None:
        # int8 adjacency blocks need the sublane (row-tile) dim to be a
        # multiple of 32 (or the full dim).
        assert requested % 32 == 0, "tile_rows must be a multiple of 32"
        return requested, _round_up(n, requested)
    candidates = (256, 128, 64) if _prefer_tm256(kind) else (128, 64)
    for tm in candidates:
        n_pad = _round_up(n, tm)
        if tm > 128 and n_pad // tm < 2:
            continue  # keep >=2 grid steps so both v7x TensorCores get work
        # Rough kernel-2 VMEM footprint: double-buffered int8 adj row tile,
        # resident h (still double-buffered -- see TODO), e/out tiles, score
        # rows, plus ~3 compiler-materialized (tm, n_pad) f32 softmax temps.
        est = (2 * tm * n_pad                       # adj int8 tiles
               + 2 * n_pad * f_pad * 4              # resident h
               + 2 * tm * f_pad * 4                 # output tile
               + 2 * tm * 128 * 4 + 4 * n_pad * 4   # e tile + dst/fill rows
               + 3 * tm * n_pad * 4)                # key/p/mask temporaries
        if est <= vmem_limit:
            return tm, n_pad
    tm = candidates[-1]
    return tm, _round_up(n, tm)


# ----------------------------------------------------------------------------
# Kernel 1: projection + per-node attention scores (lane-dense e output)
#   h = x @ W^T + b                         (tm, F_pad)
#   e = h @ A128                            (tm, 128)   col0=src, col1=dst
# ----------------------------------------------------------------------------
def _project_kernel(x_ref, wt_ref, b_ref, a2_ref, h_ref, e_ref):
    h = jnp.dot(x_ref[...], wt_ref[...], preferred_element_type=jnp.float32)
    h = h + b_ref[...]
    h_ref[...] = h
    e_ref[...] = jnp.dot(h, a2_ref[...], preferred_element_type=jnp.float32)


# ----------------------------------------------------------------------------
# Kernel 2: fused attention for one row tile
#   key    = LeakyReLU(e_src[:,None] + e_dst[None,:])   (fused as max(k, a*k))
#   masked = where(adj != 0, key, fill)   # fill = 0 for real cols (torch quirk),
#                                         #        -1e30 for padded cols
#   p      = exp(masked - rowmax)
#   out    = ELU((p @ h) * reciprocal(rowsum))          # normalize AFTER matmul
# ----------------------------------------------------------------------------
def _attention_kernel(adj_ref, e_ref, edst_ref, fill_ref, h_ref, o_ref, *,
                      alpha, apply_activation):
    e_src = e_ref[:, 0:1]                                # (tm, 1) src scores
    key = e_src + edst_ref[...]                          # (tm,1)+(1,N) -> (tm,N)
    if 0.0 < alpha < 1.0:
        key = jnp.maximum(key, alpha * key)              # LeakyReLU, 1 mul + 1 max
    else:
        key = jnp.where(key >= 0.0, key, alpha * key)    # general fallback
    masked = jnp.where(adj_ref[...] != 0, key, fill_ref[...])
    m = jnp.max(masked, axis=1, keepdims=True)
    p = jnp.exp(masked - m)
    row_sum = jnp.sum(p, axis=1, keepdims=True)          # (tm, 1)
    hp = jnp.dot(p, h_ref[...], preferred_element_type=jnp.float32)
    # approx=True would use the EUP fast path but loosens accuracy; keep exact
    # so the 1e-4 f32 parity check against the reference holds.
    hp = hp * pl.reciprocal(row_sum, approx=False)
    if apply_activation:                                  # ELU
        hp = jnp.where(hp > 0.0, hp, jnp.exp(jnp.minimum(hp, 0.0)) - 1.0)
    o_ref[...] = hp.astype(o_ref.dtype)


# ----------------------------------------------------------------------------
# Wrapper: OwnGATConv.forward (num_heads=1)
# ----------------------------------------------------------------------------
@functools.partial(jax.jit, static_argnames=("alpha", "average_head", "tile_rows"))
def own_gat_conv_forward(adj, x, w, a, bias=None, *, alpha=0.2,
                         average_head=False, tile_rows=None):
    n, in_f = x.shape
    f = w.shape[0]                      # out_features * num_heads (num_heads == 1)
    assert w.shape == (f, in_f)
    assert a.shape == (2 * f, 1)

    kind = _device_kind()
    vmem_limit = _vmem_limit_bytes(kind)

    f_pad = _round_up(f, 128)           # lane-dense feature dim
    in_f_pad = _round_up(in_f, 128)     # lane-dense contraction dim (zero-padded)
    tm, n_pad = _choose_row_tile(n, f_pad, kind, vmem_limit, tile_rows)
    grid_rows = n_pad // tm

    # Zero-padded parameter / input layouts (same math, lane-dense MXU & stores).
    x32 = jnp.zeros((n_pad, in_f_pad), jnp.float32).at[:n, :in_f].set(
        x.astype(jnp.float32))
    wt = jnp.zeros((in_f_pad, f_pad), jnp.float32).at[:in_f, :f].set(
        w.T.astype(jnp.float32))
    a2 = jnp.zeros((f_pad, 128), jnp.float32)            # lane-dense score matrix
    a2 = a2.at[:f, 0].set(a[:f, 0].astype(jnp.float32))  # a_src -> lane 0
    a2 = a2.at[:f, 1].set(a[f:, 0].astype(jnp.float32))  # a_dst -> lane 1
    b_row = jnp.zeros((1, f_pad), jnp.float32)
    if bias is not None:
        b_row = b_row.at[0, :f].set(bias.astype(jnp.float32))

    # int8 adjacency (4x less HBM/VMEM than f32); padded rows/cols are zero.
    adj_i8 = jnp.zeros((n_pad, n_pad), jnp.int8).at[:n, :n].set(
        (adj > 0).astype(jnp.int8))
    # Mask-fill row: 0 for real columns (torch masks with 0), -1e30 for padded
    # columns so they never contribute to the softmax denominator.
    fill_row = jnp.where(jnp.arange(n_pad) < n, 0.0, -1e30
                         ).astype(jnp.float32)[None, :]

    # --- kernel 1: h = x @ W^T + b ; e = h @ [a_src | a_dst | 0 ...] ---------
    h, e = pl.pallas_call(
        _project_kernel,
        out_shape=(jax.ShapeDtypeStruct((n_pad, f_pad), jnp.float32),
                   jax.ShapeDtypeStruct((n_pad, 128), jnp.float32)),
        grid=(grid_rows,),
        in_specs=[
            pl.BlockSpec((tm, in_f_pad), lambda i: (i, 0)),     # x row tile
            pl.BlockSpec((in_f_pad, f_pad), lambda i: (0, 0)),  # W^T (resident)
            pl.BlockSpec((1, f_pad), lambda i: (0, 0)),         # bias row
            pl.BlockSpec((f_pad, 128), lambda i: (0, 0)),       # [a_src|a_dst|0..]
        ],
        out_specs=(pl.BlockSpec((tm, f_pad), lambda i: (i, 0)),
                   pl.BlockSpec((tm, 128), lambda i: (i, 0))),
        compiler_params=pltpu.CompilerParams(
            dimension_semantics=("parallel",)),
        cost_estimate=pl.CostEstimate(
            flops=2 * n_pad * in_f_pad * f_pad + 2 * n_pad * f_pad * 128,
            transcendentals=0,
            bytes_accessed=4 * (n_pad * in_f_pad + in_f_pad * f_pad
                                + n_pad * f_pad + n_pad * 128)),
    )(x32, wt, b_row, a2)

    # One-time (N,)->(1,N) layout change for the dst scores, out of the tile loop.
    e_dst_row = e[:, 1].reshape(1, n_pad)

    # --- kernel 2: fused logits + mask + softmax + aggregation + ELU ---------
    kernel = functools.partial(_attention_kernel, alpha=float(alpha),
                               apply_activation=not average_head)
    out_pad = pl.pallas_call(
        kernel,
        out_shape=jax.ShapeDtypeStruct((n_pad, f_pad), jnp.float32),
        grid=(grid_rows,),
        in_specs=[
            pl.BlockSpec((tm, n_pad), lambda i: (i, 0)),     # adjacency tile, int8
            pl.BlockSpec((tm, 128), lambda i: (i, 0)),       # e (src in lane 0)
            pl.BlockSpec((1, n_pad), lambda i: (0, 0)),      # dst scores (all nodes)
            pl.BlockSpec((1, n_pad), lambda i: (0, 0)),      # column fill mask
            pl.BlockSpec((n_pad, f_pad), lambda i: (0, 0)),  # h, VMEM-resident
        ],
        out_specs=pl.BlockSpec((tm, f_pad), lambda i: (i, 0)),
        compiler_params=pltpu.CompilerParams(
            dimension_semantics=("parallel",),
            vmem_limit_bytes=vmem_limit),
        cost_estimate=pl.CostEstimate(
            flops=2 * n_pad * n_pad * f_pad + 8 * n_pad * n_pad,
            transcendentals=n_pad * n_pad + n_pad * f_pad + n_pad,
            bytes_accessed=n_pad * n_pad
            + 4 * (2 * n_pad * f_pad + n_pad * 128 + 2 * n_pad)),
    )(adj_i8, e, e_dst_row, fill_row, h)

    return out_pad[:n, :f]


# ----------------------------------------------------------------------------
# Pure-JAX reference mirroring the torch forward exactly (incl. the N*N concat)
# ----------------------------------------------------------------------------
def reference_forward(adj, x, w, a, alpha=0.2, bias=None):
    h = x @ w.T
    if bias is not None:
        h = h + bias
    n, f = h.shape
    rep_src = jnp.repeat(h, n, axis=0)           # _h.repeat(1, n).view(n*n, -1)
    rep_dst = jnp.tile(h, (n, 1))                # _h.repeat(n, 1)
    concat_f = jnp.concatenate([rep_src, rep_dst], axis=1).reshape(n, n, 2 * f)
    key = jnp.squeeze(concat_f @ a, axis=2)
    key = jnp.where(key >= 0.0, key, alpha * key)            # LeakyReLU
    masked = jnp.where(adj > 0, key, jnp.zeros_like(key))
    att = jax.nn.softmax(masked, axis=1)
    h_prime = att @ h
    return jax.nn.elu(h_prime)                               # activation


if __name__ == "__main__":
    root = jax.random.PRNGKey(0)
    case_keys = jax.random.split(root, 2)

    def run_case(key, num_nodes, in_features, out_features, use_bias):
        k_adj, k_x, k_w, k_a, k_b = jax.random.split(key, 5)
        adj = jax.random.bernoulli(k_adj, p=0.1,
                                   shape=(num_nodes, num_nodes)).astype(jnp.float32)
        adj = jnp.maximum(adj, jnp.eye(num_nodes, dtype=jnp.float32))  # self loops
        x = jax.random.normal(k_x, (num_nodes, in_features), jnp.float32)
        wb = (6.0 / (in_features + out_features)) ** 0.5
        w = jax.random.uniform(k_w, (out_features, in_features), jnp.float32, -wb, wb)
        ab = (6.0 / (2 * out_features + 1)) ** 0.5
        a = jax.random.uniform(k_a, (2 * out_features, 1), jnp.float32, -ab, ab)
        bias = (0.1 * jax.random.normal(k_b, (out_features,), jnp.float32)
                if use_bias else None)

        out = own_gat_conv_forward(adj, x, w, a, bias, alpha=0.2)
        out = jax.block_until_ready(out)

        ref = reference_forward(adj, x, w, a, alpha=0.2, bias=bias)
        assert out.shape == (num_nodes, out_features)
        err = float(jnp.max(jnp.abs(out - ref)))
        assert jnp.allclose(out, ref, atol=1e-4, rtol=1e-4), err

    # Clean multiple-of-128 shapes (no padding path).
    run_case(case_keys[0], 256, 64, 32, use_bias=False)
    # Awkward N + bias: exercises row padding and -1e30 masking of padded cols.
    run_case(case_keys[1], 200, 48, 24, use_bias=True)

    print("KERNEL_OK")
</pallas_src>

<mosaic_0001>
module attributes {stable_mosaic.version = 11 : i64} {
  func.func @_project_kernel(%arg0: i32, %arg1: memref<128x128xf32, #tpu.memory_space<vmem>>, %arg2: memref<128x128xf32, #tpu.memory_space<vmem>>, %arg3: memref<1x128xf32, #tpu.memory_space<vmem>>, %arg4: memref<128x128xf32, #tpu.memory_space<vmem>>, %arg5: memref<128x128xf32, #tpu.memory_space<vmem>>, %arg6: memref<128x128xf32, #tpu.memory_space<vmem>>) attributes {dimension_semantics = [#tpu.dimension_semantics<parallel>], iteration_bounds = array<i64: 2>, scalar_prefetch = 0 : i64, scratch_operands = 0 : i64, tpu.core_type = #tpu.core_type<tc>, window_params = [{transform_indices = @transform_0, window_bounds = array<i64: 128, 128>}, {pipeline_mode = #tpu.pipeline_mode<synchronous>, transform_indices = @transform_1, window_bounds = array<i64: 128, 128>}, {pipeline_mode = #tpu.pipeline_mode<synchronous>, transform_indices = @transform_2, window_bounds = array<i64: 1, 128>}, {pipeline_mode = #tpu.pipeline_mode<synchronous>, transform_indices = @transform_3, window_bounds = array<i64: 128, 128>}, {transform_indices = @transform_4, window_bounds = array<i64: 128, 128>}, {transform_indices = @transform_5, window_bounds = array<i64: 128, 128>}]} {
    %c0 = arith.constant 0 : index
    %c0_0 = arith.constant 0 : index
    %0 = vector.load %arg1[%c0, %c0_0] : memref<128x128xf32, #tpu.memory_space<vmem>>, vector<128x128xf32>
    %c0_1 = arith.constant 0 : index
    %c0_2 = arith.constant 0 : index
    %1 = vector.load %arg2[%c0_1, %c0_2] : memref<128x128xf32, #tpu.memory_space<vmem>>, vector<128x128xf32>
    %cst = arith.constant dense<0.000000e+00> : vector<128x128xf32>
    %2 = tpu.matmul %0, %1, %cst {dimension_numbers = #tpu.dot_dimension_numbers<[1], [0], [0], [1], [0, 0, 1, 1], [], []>} : vector<128x128xf32>, vector<128x128xf32>, vector<128x128xf32> -> vector<128x128xf32>
    %c0_3 = arith.constant 0 : index
    %c0_4 = arith.constant 0 : index
    %3 = vector.load %arg3[%c0_3, %c0_4] : memref<1x128xf32, #tpu.memory_space<vmem>>, vector<1x128xf32>
    %4 = vector.broadcast %3 : vector<1x128xf32> to vector<128x128xf32>
    %5 = arith.addf %2, %4 : vector<128x128xf32>
    %c0_5 = arith.constant 0 : index
    %c0_6 = arith.constant 0 : index
    %6 = vector.load %arg5[%c0_5, %c0_6] : memref<128x128xf32, #tpu.memory_space<vmem>>, vector<128x128xf32>
    tpu.vector_store %arg5[%c0_5, %c0_6], %5 {strides = array<i32>} : memref<128x128xf32, #tpu.memory_space<vmem>>, vector<128x128xf32>,
    %c0_7 = arith.constant 0 : index
    %c0_8 = arith.constant 0 : index
    %7 = vector.load %arg4[%c0_7, %c0_8] : memref<128x128xf32, #tpu.memory_space<vmem>>, vector<128x128xf32>
    %cst_9 = arith.constant dense<0.000000e+00> : vector<128x128xf32>
    %8 = tpu.matmul %5, %7, %cst_9 {dimension_numbers = #tpu.dot_dimension_numbers<[1], [0], [0], [1], [0, 0, 1, 1], [], []>} : vector<128x128xf32>, vector<128x128xf32>, vector<128x128xf32> -> vector<128x128xf32>
    %c0_10 = arith.constant 0 : index
    %c0_11 = arith.constant 0 : index
    %9 = vector.load %arg6[%c0_10, %c0_11] : memref<128x128xf32, #tpu.memory_space<vmem>>, vector<128x128xf32>
    tpu.vector_store %arg6[%c0_10, %c0_11], %8 {strides = array<i32>} : memref<128x128xf32, #tpu.memory_space<vmem>>, vector<128x128xf32>,
    return
  }
  func.func @transform_0(%arg0: i32) -> (i32, i32) {
    %c0_i32 = arith.constant 0 : i32
    %c0_i32_0 = arith.constant 0 : i32
    return %arg0, %c0_i32 : i32, i32
  }
  func.func @transform_1(%arg0: i32) -> (i32, i32) {
    %c0_i32 = arith.constant 0 : i32
    %c0_i32_0 = arith.constant 0 : i32
    %c0_i32_1 = arith.constant 0 : i32
    return %c0_i32, %c0_i32_0 : i32, i32
  }
  func.func @transform_2(%arg0: i32) -> (i32, i32) {
    %c0_i32 = arith.constant 0 : i32
    %c0_i32_0 = arith.constant 0 : i32
    %c0_i32_1 = arith.constant 0 : i32
    return %c0_i32, %c0_i32_0 : i32, i32
  }
  func.func @transform_3(%arg0: i32) -> (i32, i32) {
    %c0_i32 = arith.constant 0 : i32
    %c0_i32_0 = arith.constant 0 : i32
    %c0_i32_1 = arith.constant 0 : i32
    return %c0_i32, %c0_i32_0 : i32, i32
  }
  func.func @transform_4(%arg0: i32) -> (i32, i32) {
    %c0_i32 = arith.constant 0 : i32
    %c0_i32_0 = arith.constant 0 : i32
    return %arg0, %c0_i32 : i32, i32
  }
  func.func @transform_5(%arg0: i32) -> (i32, i32) {
    %c0_i32 = arith.constant 0 : i32
    %c0_i32_0 = arith.constant 0 : i32
    return %arg0, %c0_i32 : i32, i32
  }
}

module attributes {stable_mosaic.version = 11 : i64} {
  func.func @_attention_kernel(%arg0: i32, %arg1: memref<128x256xi8, #tpu.memory_space<vmem>>, %arg2: memref<128x128xf32, #tpu.memory_space<vmem>>, %arg3: memref<1x256xf32, #tpu.memory_space<vmem>>, %arg4: memref<1x256xf32, #tpu.memory_space<vmem>>, %arg5: memref<256x128xf32, #tpu.memory_space<vmem>>, %arg6: memref<128x128xf32, #tpu.memory_space<vmem>>) attributes {dimension_semantics = [#tpu.dimension_semantics<parallel>], iteration_bounds = array<i64: 2>, scalar_prefetch = 0 : i64, scratch_operands = 0 : i64, tpu.core_type = #tpu.core_type<tc>, window_params = [{transform_indices = @transform_0, window_bounds = array<i64: 128, 256>}, {transform_indices = @transform_1, window_bounds = array<i64: 128, 128>}, {pipeline_mode = #tpu.pipeline_mode<synchronous>, transform_indices = @transform_2, window_bounds = array<i64: 1, 256>}, {pipeline_mode = #tpu.pipeline_mode<synchronous>, transform_indices = @transform_3, window_bounds = array<i64: 1, 256>}, {pipeline_mode = #tpu.pipeline_mode<synchronous>, transform_indices = @transform_4, window_bounds = array<i64: 256, 128>}, {transform_indices = @transform_5, window_bounds = array<i64: 128, 128>}]} {
    %c0 = arith.constant 0 : index
    %c0_0 = arith.constant 0 : index
    %0 = vector.load %arg2[%c0, %c0_0] : memref<128x128xf32, #tpu.memory_space<vmem>>, vector<128x1xf32>
    %c0_1 = arith.constant 0 : index
    %c0_2 = arith.constant 0 : index
    %1 = vector.load %arg3[%c0_1, %c0_2] : memref<1x256xf32, #tpu.memory_space<vmem>>, vector<1x256xf32>
    %2 = vector.broadcast %0 : vector<128x1xf32> to vector<128x256xf32>
    %3 = vector.broadcast %1 : vector<1x256xf32> to vector<128x256xf32>
    %4 = arith.addf %2, %3 : vector<128x256xf32>
    %cst = arith.constant 2.000000e-01 : f32
    %5 = vector.broadcast %cst : f32 to vector<128x256xf32>
    %6 = arith.mulf %5, %4 : vector<128x256xf32>
    %7 = arith.maximumf %4, %6 : vector<128x256xf32>
    %c0_3 = arith.constant 0 : index
    %c0_4 = arith.constant 0 : index
    %8 = vector.load %arg1[%c0_3, %c0_4] : memref<128x256xi8, #tpu.memory_space<vmem>>, vector<128x256xi8>
    %c0_i8 = arith.constant 0 : i8
    %9 = vector.broadcast %c0_i8 : i8 to vector<128x256xi8>
    %10 = arith.cmpi ne, %8, %9 : vector<128x256xi8>
    %c0_5 = arith.constant 0 : index
    %c0_6 = arith.constant 0 : index
    %11 = vector.load %arg4[%c0_5, %c0_6] : memref<1x256xf32, #tpu.memory_space<vmem>>, vector<1x256xf32>
    %12 = vector.shape_cast %11 : vector<1x256xf32> to vector<1x256xf32>
    %13 = vector.broadcast %12 : vector<1x256xf32> to vector<128x256xf32>
    %14 = arith.select %10, %7, %13 : vector<128x256xi1>, vector<128x256xf32>
    %cst_7 = arith.constant dense<0xFF800000> : vector<128xf32>
    %15 = vector.multi_reduction <maximumf>, %14, %cst_7 [1] : vector<128x256xf32> to vector<128xf32>
    %16 = vector.shape_cast %15 : vector<128xf32> to vector<128x1xf32>
    %17 = vector.broadcast %16 : vector<128x1xf32> to vector<128x256xf32>
    %18 = arith.subf %14, %17 : vector<128x256xf32>
    %19 = math.exp %18 : vector<128x256xf32>
    %cst_8 = arith.constant dense<0.000000e+00> : vector<128xf32>
    %20 = vector.multi_reduction <add>, %19, %cst_8 [1] : vector<128x256xf32> to vector<128xf32>
    %21 = vector.shape_cast %20 : vector<128xf32> to vector<128x1xf32>
    %c0_9 = arith.constant 0 : index
    %c0_10 = arith.constant 0 : index
    %22 = vector.load %arg5[%c0_9, %c0_10] : memref<256x128xf32, #tpu.memory_space<vmem>>, vector<256x128xf32>
    %cst_11 = arith.constant dense<0.000000e+00> : vector<128x128xf32>
    %23 = tpu.matmul %19, %22, %cst_11 {dimension_numbers = #tpu.dot_dimension_numbers<[1], [0], [0], [1], [0, 0, 1, 1], [], []>} : vector<128x256xf32>, vector<256x128xf32>, vector<128x128xf32> -> vector<128x128xf32>
    %24 = tpu.reciprocal %21 : vector<128x1xf32> -> vector<128x1xf32>
    %25 = vector.broadcast %24 : vector<128x1xf32> to vector<128x128xf32>
    %26 = arith.mulf %23, %25 : vector<128x128xf32>
    %cst_12 = arith.constant 0.000000e+00 : f32
    %27 = vector.broadcast %cst_12 : f32 to vector<128x128xf32>
    %28 = arith.cmpf ogt, %26, %27 : vector<128x128xf32>
    %cst_13 = arith.constant 0.000000e+00 : f32
    %29 = vector.broadcast %cst_13 : f32 to vector<128x128xf32>
    %30 = arith.minimumf %26, %29 : vector<128x128xf32>
    %31 = math.exp %30 : vector<128x128xf32>
    %cst_14 = arith.constant 1.000000e+00 : f32
    %32 = vector.broadcast %cst_14 : f32 to vector<128x128xf32>
    %33 = arith.subf %31, %32 : vector<128x128xf32>
    %34 = arith.select %28, %26, %33 : vector<128x128xi1>, vector<128x128xf32>
    %c0_15 = arith.constant 0 : index
    %c0_16 = arith.constant 0 : index
    %35 = vector.load %arg6[%c0_15, %c0_16] : memref<128x128xf32, #tpu.memory_space<vmem>>, vector<128x128xf32>
    tpu.vector_store %arg6[%c0_15, %c0_16], %34 {strides = array<i32>} : memref<128x128xf32, #tpu.memory_space<vmem>>, vector<128x128xf32>,
    return
  }
  func.func @transform_0(%arg0: i32) -> (i32, i32) {
    %c0_i32 = arith.constant 0 : i32
    %c0_i32_0 = arith.constant 0 : i32
    return %arg0, %c0_i32 : i32, i32
  }
  func.func @transform_1(%arg0: i32) -> (i32, i32) {
    %c0_i32 = arith.constant 0 : i32
    %c0_i32_0 = arith.constant 0 : i32
    return %arg0, %c0_i32 : i32, i32
  }
  func.func @transform_2(%arg0: i32) -> (i32, i32) {
    %c0_i32 = arith.constant 0 : i32
    %c0_i32_0 = arith.constant 0 : i32
    %c0_i32_1 = arith.constant 0 : i32
    return %c0_i32, %c0_i32_0 : i32, i32
  }
  func.func @transform_3(%arg0: i32) -> (i32, i32) {
    %c0_i32 = arith.constant 0 : i32
    %c0_i32_0 = arith.constant 0 : i32
    %c0_i32_1 = arith.constant 0 : i32
    return %c0_i32, %c0_i32_0 : i32, i32
  }
  func.func @transform_4(%arg0: i32) -> (i32, i32) {
    %c0_i32 = arith.constant 0 : i32
    %c0_i32_0 = arith.constant 0 : i32
    %c0_i32_1 = arith.constant 0 : i32
    return %c0_i32, %c0_i32_0 : i32, i32
  }
  func.func @transform_5(%arg0: i32) -> (i32, i32) {
    %c0_i32 = arith.constant 0 : i32
    %c0_i32_0 = arith.constant 0 : i32
    return %arg0, %c0_i32 : i32, i32
  }
}

</mosaic_0001>

<llo_original>
// kernel: own_gat_conv_forward.2
$region0: #{own_gat_conv_forward.2}
  #allocation0 [shape = 'u32[]', space=smem, size = 0x4, offset = 0x4, fixed_abs, tag = 'smem constant byte address 0x4 - core index']
  #allocation1 [shape = 'u32[72,128]{1,0:T(1,128)}', space=vmem, size = 0x9000, scoped, tag = 'internal scratch']
  %s0 = inlined_call_operand.vmem [shape: f32[256,128], index: 0, kind: input, shape index: {}]
  %s1 = inlined_call_operand.vmem [shape: f32[128,128], index: 1, kind: input, shape index: {}]
  %s2 = inlined_call_operand.vmem [shape: f32[1,128], index: 2, kind: input, shape index: {}]
  %s3 = inlined_call_operand.vmem [shape: f32[128,128], index: 3, kind: input, shape index: {}]
  %s4 = inlined_call_operand.vmem [shape: f32[256,128], index: 4, kind: output, shape index: {0}]
  %s5 = inlined_call_operand.vmem [shape: f32[256,128], index: 5, kind: output, shape index: {1}]
  %6 = xla_tuple %s4, %s5
  %s7 = sld [smem:[#allocation0]]
  $region57: #{own_gat_conv_forward.2} parent=0
    _
  %s9 = ssub.s32 1, %s7
  %s10 = scalar_select 0, %s9, %s7
  loop: start=0, step=1, limit=4
  $region2: #{own_gat_conv_forward.2} parent=0 // loop_pre_header
    _
  $region3: #{own_gat_conv_forward.2} parent=0 // loop_header
    %s12 = sphi 0, %s16
    %p13 = scmp.ge.s32.totalorder %s12, 4
    %s22 = sphi 0, %s24
    %s25 = sphi 0, %s22
    %s26 = sphi 0, %s25
    %s42 = sphi 0, %s26
    %s46 = sphi 0, %s46
    %s48 = sphi 0, %s46
    %s49 = sphi 0, %s48
    %s63 = sphi 0, %s49
    %s67 = sphi 0, %s67
    %s69 = sphi 0, %s67
    %s70 = sphi 0, %s69
    %s84 = sphi 0, %s70
    %s88 = sphi 0, %s88
    %s90 = sphi 0, %s88
    %s91 = sphi 0, %s90
    %s105 = sphi 0, %s91
    %s111 = sphi 0, %s113
    %s114 = sphi 0, %s111
    %s115 = sphi 0, %s114
    %s131 = sphi 0, %s115
    %s137 = sphi 0, %s139
    %s140 = sphi 0, %s137
    %s141 = sphi 0, %s140
    %s157 = sphi 0, %s141
  $region4: #{own_gat_conv_forward.2} parent=0 // loop_header_branch
    %15 = sbr.rel (%p13) target = $region8
  $region5: #{own_gat_conv_forward.2} parent=0 // loop_body
    %s17 = ssub.s32 %s12, 1
    %s18 = ssub.s32 %s12, 2
    %s19 = sadd.s32 %s12, 1
    %s20 = ssub.s32 %s12, %s19
    %p21 = scmp.eq.s32.totalorder %s20, 0
    %s23 = sadd.s32 %s22, 1
    %s24 = scalar_select %p21, %s22, %s23
    %p27 = pneg %p21
    %p28 = scmp.eq.s32.totalorder %s12, 1
    %p29 = por %p27, %p28
    %p30 = scmp.ne.s32.totalorder %s22, %s25
    %p31 = scmp.eq.s32.totalorder %s12, 0
    %p32 = por %p30, %p31
    %p33 = scmp.ne.s32.totalorder %s22, %s25
    %p34 = scmp.eq.s32.totalorder %s17, 1
    %p35 = por %p33, %p34
    %p36 = scmp.ne.s32.totalorder %s25, %s26
    %p37 = scmp.eq.s32.totalorder %s17, 0
    %p38 = por %p36, %p37
    %p39 = scmp.ne.s32.totalorder %s25, %s26
    %p40 = scmp.eq.s32.totalorder %s18, 1
    %p41 = por %p39, %p40
    %p43 = scmp.ne.s32.totalorder %s26, %s42
    %p44 = scmp.eq.s32.totalorder %s18, 0
    %p45 = por %p43, %p44
    %s47 = sadd.s32 %s46, 1
    %p50 = scmp.eq.s32.totalorder %s12, 1
    %p51 = scmp.ne.s32.totalorder %s46, %s48
    %p52 = scmp.eq.s32.totalorder %s12, 0
    %p53 = por %p51, %p52
    %p54 = scmp.ne.s32.totalorder %s46, %s48
    %p55 = scmp.eq.s32.totalorder %s17, 1
    %p56 = por %p54, %p55
    %p57 = scmp.ne.s32.totalorder %s48, %s49
    %p58 = scmp.eq.s32.totalorder %s17, 0
    %p59 = por %p57, %p58
    %p60 = scmp.ne.s32.totalorder %s48, %s49
    %p61 = scmp.eq.s32.totalorder %s18, 1
    %p62 = por %p60, %p61
    %p64 = scmp.ne.s32.totalorder %s49, %s63
    %p65 = scmp.eq.s32.totalorder %s18, 0
    %p66 = por %p64, %p65
    %s68 = sadd.s32 %s67, 1
    %p71 = scmp.eq.s32.totalorder %s12, 1
    %p72 = scmp.ne.s32.totalorder %s67, %s69
    %p73 = scmp.eq.s32.totalorder %s12, 0
    %p74 = por %p72, %p73
    %p75 = scmp.ne.s32.totalorder %s67, %s69
    %p76 = scmp.eq.s32.totalorder %s17, 1
    %p77 = por %p75, %p76
    %p78 = scmp.ne.s32.totalorder %s69, %s70
    %p79 = scmp.eq.s32.totalorder %s17, 0
    %p80 = por %p78, %p79
    %p81 = scmp.ne.s32.totalorder %s69, %s70
    %p82 = scmp.eq.s32.totalorder %s18, 1
    %p83 = por %p81, %p82
    %p85 = scmp.ne.s32.totalorder %s70, %s84
    %p86 = scmp.eq.s32.totalorder %s18, 0
    %p87 = por %p85, %p86
    %s89 = sadd.s32 %s88, 1
    %p92 = scmp.eq.s32.totalorder %s12, 1
    %p93 = scmp.ne.s32.totalorder %s88, %s90
    %p94 = scmp.eq.s32.totalorder %s12, 0
    %p95 = por %p93, %p94
    %p96 = scmp.ne.s32.totalorder %s88, %s90
    %p97 = scmp.eq.s32.totalorder %s17, 1
    %p98 = por %p96, %p97
    %p99 = scmp.ne.s32.totalorder %s90, %s91
    %p100 = scmp.eq.s32.totalorder %s17, 0
    %p101 = por %p99, %p100
    %p102 = scmp.ne.s32.totalorder %s90, %s91
    %p103 = scmp.eq.s32.totalorder %s18, 1
    %p104 = por %p102, %p103
    %p106 = scmp.ne.s32.totalorder %s91, %s105
    %p107 = scmp.eq.s32.totalorder %s18, 0
    %p108 = por %p106, %p107
    %s109 = ssub.s32 %s12, %s19
    %p110 = scmp.eq.s32.totalorder %s109, 0
    %s112 = sadd.s32 %s111, 1
    %s113 = scalar_select %p110, %s111, %s112
    %p116 = pneg %p110
    %p117 = scmp.eq.s32.totalorder %s12, 1
    %p118 = por %p116, %p117
    %p119 = scmp.ne.s32.totalorder %s111, %s114
    %p120 = scmp.eq.s32.totalorder %s12, 0
    %p121 = por %p119, %p120
    %p122 = scmp.ne.s32.totalorder %s111, %s114
    %p123 = scmp.eq.s32.totalorder %s17, 1
    %p124 = por %p122, %p123
    %p125 = scmp.ne.s32.totalorder %s114, %s115
    %p126 = scmp.eq.s32.totalorder %s17, 0
    %p127 = por %p125, %p126
    %p128 = scmp.ne.s32.totalorder %s114, %s115
    %p129 = scmp.eq.s32.totalorder %s18, 1
    %p130 = por %p128, %p129
    %p132 = scmp.ne.s32.totalorder %s115, %s131
    %p133 = scmp.eq.s32.totalorder %s18, 0
    %p134 = por %p132, %p133
    %s135 = ssub.s32 %s12, %s19
    %p136 = scmp.eq.s32.totalorder %s135, 0
    %s138 = sadd.s32 %s137, 1
    %s139 = scalar_select %p136, %s137, %s138
    %p142 = pneg %p136
    %p143 = scmp.eq.s32.totalorder %s12, 1
    %p144 = por %p142, %p143
    %p145 = scmp.ne.s32.totalorder %s137, %s140
    %p146 = scmp.eq.s32.totalorder %s12, 0
    %p147 = por %p145, %p146
    %p148 = scmp.ne.s32.totalorder %s137, %s140
    %p149 = scmp.eq.s32.totalorder %s17, 1
    %p150 = por %p148, %p149
    %p151 = scmp.ne.s32.totalorder %s140, %s141
    %p152 = scmp.eq.s32.totalorder %s17, 0
    %p153 = por %p151, %p152
    %p154 = scmp.ne.s32.totalorder %s140, %s141
    %p155 = scmp.eq.s32.totalorder %s18, 1
    %p156 = por %p154, %p155
    %p158 = scmp.ne.s32.totalorder %s141, %s157
    %p159 = scmp.eq.s32.totalorder %s18, 0
    %p160 = por %p158, %p159
    %p161 = scmp.le.s32.totalorder 1, %s12
    %p162 = scmp.lt.s32.totalorder %s12, 3
    %p163 = pnand %p161, %p162
    %p164 = pneg %p163
    // Predicated region
    $region9: #{own_gat_conv_forward.2} parent=5 // pred_check
      _
    $region10: #{own_gat_conv_forward.2} parent=5 // pred_check_branch
      %166 = sbr.rel (%p163) target = $region12
    $region11: #{own_gat_conv_forward.2} parent=5 // pred_region
      %s167 = ssub.s32 %s12, 1
      // Predicated region
      $region13: #{own_gat_conv_forward.2} parent=11 // pred_check
        %p168 = pneg %p59
      $region14: #{own_gat_conv_forward.2} parent=11 // pred_check_branch
        %170 = sbr.rel (%p168) target = $region16
      $region15: #{own_gat_conv_forward.2} parent=11 // pred_region
        _
      $region16: #{own_gat_conv_forward.2} parent=11 // pred_fallthru
        _
      // Predicated region
      $region17: #{own_gat_conv_forward.2} parent=11 // pred_check
        %p171 = pneg %p80
      $region18: #{own_gat_conv_forward.2} parent=11 // pred_check_branch
        %173 = sbr.rel (%p171) target = $region20
      $region19: #{own_gat_conv_forward.2} parent=11 // pred_region
        _
      $region20: #{own_gat_conv_forward.2} parent=11 // pred_fallthru
        _
      // Predicated region
      $region21: #{own_gat_conv_forward.2} parent=11 // pred_check
        %p174 = pneg %p101
      $region22: #{own_gat_conv_forward.2} parent=11 // pred_check_branch
        %176 = sbr.rel (%p174) target = $region24
      $region23: #{own_gat_conv_forward.2} parent=11 // pred_region
        _
      $region24: #{own_gat_conv_forward.2} parent=11 // pred_fallthru
        _
    $region12: #{own_gat_conv_forward.2} parent=5 // pred_fallthru
      _
    %p177 = scmp.lt.s32.totalorder %s12, 2
    // Predicated region
    $region25: #{own_gat_conv_forward.2} parent=5 // pred_check
      %p178 = pneg %p177
    $region26: #{own_gat_conv_forward.2} parent=5 // pred_check_branch
      %180 = sbr.rel (%p178) target = $region28
    $region27: #{own_gat_conv_forward.2} parent=5 // pred_region
      // Predicated region
      $region29: #{own_gat_conv_forward.2} parent=27 // pred_check
        %p181 = pneg %p32
      $region30: #{own_gat_conv_forward.2} parent=27 // pred_check_branch
        %183 = sbr.rel (%p181) target = $region32
      $region31: #{own_gat_conv_forward.2} parent=27 // pred_region
        %s184 = smul.u32 16, %s12
        %p185 = scmp.lt.s32.totalorder %s184, 31
        %s186 = scalar_select %p185, %s184, 31
        %s187 = smul.addr %s186, 8
        %s188 = scalar_lea.vmem %s0, %s187
        %s189 = smul.u32 16, %s12
      $region32: #{own_gat_conv_forward.2} parent=27 // pred_fallthru
        _
    $region28: #{own_gat_conv_forward.2} parent=5 // pred_fallthru
      _
    %p190 = scmp.le.s32.totalorder 1, %s12
    %p191 = scmp.lt.s32.totalorder %s12, 3
    %p192 = pnand %p190, %p191
    %p193 = pneg %p192
    // Predicated region
    $region33: #{own_gat_conv_forward.2} parent=5 // pred_check
      _
    $region34: #{own_gat_conv_forward.2} parent=5 // pred_check_branch
      %195 = sbr.rel (%p192) target = $region36
    $region35: #{own_gat_conv_forward.2} parent=5 // pred_region
      %s196 = ssub.s32 %s12, 1
      %s197 = smul.u32 16, %s17
      %p198 = scmp.lt.s32.totalorder %s197, 31
      %s199 = scalar_select %p198, %s197, 31
      %s200 = smul.addr %s199, 8
      %s201 = scalar_lea.vmem %s0, %s200
      %p202 = pneg %p38
      %p203 = pneg %p35
      %p204 = pneg %p59
      %p205 = pneg %p56
      %p206 = pneg %p80
      %p207 = pneg %p77
      %p208 = pneg %p101
      %p209 = pneg %p98
      %p210 = pneg %p127
      %p211 = pneg %p124
      %s212 = smul.u32 16, %s17
      %p213 = scmp.lt.s32.totalorder %s212, 31
      %s214 = scalar_select %p213, %s212, 31
      %s215 = smul.addr %s214, 8
      %s216 = scalar_lea.vmem %s4, %s215
      %p217 = pneg %p153
      %p218 = pneg %p150
      %s219 = smul.u32 16, %s17
      %p220 = scmp.lt.s32.totalorder %s219, 31
      %s221 = scalar_select %p220, %s219, 31
      %s222 = smul.addr %s221, 8
      %s223 = scalar_lea.vmem %s5, %s222
      %s224 = smul.u32 16, %s17
      %p225 = scmp.lt.s32.totalorder %s224, 31
      %s226 = scalar_select %p225, %s224, 31
      %s227 = smul.addr %s226, 8
      %s228 = scalar_lea.vmem %s0, %s227
      %s229 = smul.u32 16, %s17
      %s230 = smul.u32 16, %s17
      %p231 = scmp.lt.s32.totalorder %s230, 31
      %s232 = scalar_select %p231, %s230, 31
      %s233 = smul.addr %s232, 8
      %s234 = scalar_lea.vmem %s4, %s233
      %s235 = smul.u32 16, %s17
      %s236 = smul.u32 16, %s17
      %p237 = scmp.lt.s32.totalorder %s236, 31
      %s238 = scalar_select %p237, %s236, 31
      %s239 = smul.addr %s238, 8
      %s240 = scalar_lea.vmem %s5, %s239
      %s241 = smul.u32 16, %s17
      %v242 = vld [vmem:[%s228] sm:$0xff]
      %v243 = vld [vmem:[%s228 + $0x8] sm:$0xff]
      %v244 = vld [vmem:[%s228 + $0x10] sm:$0xff]
      %v245 = vld [vmem:[%s228 + $0x18] sm:$0xff]
      %v246 = vld [vmem:[%s228 + $0x20] sm:$0xff]
      %v247 = vld [vmem:[%s228 + $0x28] sm:$0xff]
      %v248 = vld [vmem:[%s228 + $0x30] sm:$0xff]
      %v249 = vld [vmem:[%s228 + $0x38] sm:$0xff]
      %v250 = vld [vmem:[%s228 + $0x40] sm:$0xff]
      %v251 = vld [vmem:[%s228 + $0x48] sm:$0xff]
      %v252 = vld [vmem:[%s228 + $0x50] sm:$0xff]
      %v253 = vld [vmem:[%s228 + $0x58] sm:$0xff]
      %v254 = vld [vmem:[%s228 + $0x60] sm:$0xff]
      %v255 = vld [vmem:[%s228 + $0x68] sm:$0xff]
      %v256 = vld [vmem:[%s228 + $0x70] sm:$0xff]
      %v257 = vld [vmem:[%s228 + $0x78] sm:$0xff]
      %v258 = vld [vmem:[%s1] sm:$0xff]
      %v259 = vld [vmem:[%s1 + $0x8] sm:$0xff]
      %v260 = vld [vmem:[%s1 + $0x10] sm:$0xff]
      %v261 = vld [vmem:[%s1 + $0x18] sm:$0xff]
      %v262 = vld [vmem:[%s1 + $0x20] sm:$0xff]
      %v263 = vld [vmem:[%s1 + $0x28] sm:$0xff]
      %v264 = vld [vmem:[%s1 + $0x30] sm:$0xff]
      %v265 = vld [vmem:[%s1 + $0x38] sm:$0xff]
      %v266 = vld [vmem:[%s1 + $0x40] sm:$0xff]
      %v267 = vld [vmem:[%s1 + $0x48] sm:$0xff]
      %v268 = vld [vmem:[%s1 + $0x50] sm:$0xff]
      %v269 = vld [vmem:[%s1 + $0x58] sm:$0xff]
      %v270 = vld [vmem:[%s1 + $0x60] sm:$0xff]
      %v271 = vld [vmem:[%s1 + $0x68] sm:$0xff]
      %v272 = vld [vmem:[%s1 + $0x70] sm:$0xff]
      %v273 = vld [vmem:[%s1 + $0x78] sm:$0xff]
      %v274 = vld [vmem:[%s2] sm:$0x1]
      %v276 = vperm.slane %v274, 0
      %278 = vmatpush.msra.mxu0 %v273
      %279 = vmatpush.msra.mxu0 %v272
      %280 = vmatpush.msra.mxu0 %v271
      %281 = vmatpush.msra.mxu0 %v270
      %282 = vmatpush.msra.mxu0 %v269
      %283 = vmatpush.msra.mxu0 %v268
      %284 = vmatpush.msra.mxu0 %v267
      %285 = vmatpush.msra.mxu0 %v266
      %286 = vmatpush.msra.mxu0 %v265
      %287 = vmatpush.msra.mxu0 %v264
      %288 = vmatpush.msra.mxu0 %v263
      %289 = vmatpush.msra.mxu0 %v262
      %290 = vmatpush.msra.mxu0 %v261
      %291 = vmatpush.msra.mxu0 %v260
      %292 = vmatpush.msra.mxu0 %v259
      %293 = vmatpush.msra.mxu0 %v258
      %294 = vmatmul.f32.gmra.mxu0 %v242
      %v295 = vpop.f32.mrf.mxu0
      %v296 = vadd.f32 %v276, %v295
      %297 = vmatmul.f32.gmra.mxu0 %v243
      %v298 = vpop.f32.mrf.mxu0
      %v299 = vadd.f32 %v276, %v298
      %300 = vmatmul.f32.gmra.mxu0 %v244
      %v301 = vpop.f32.mrf.mxu0
      %v302 = vadd.f32 %v276, %v301
      %303 = vmatmul.f32.gmra.mxu0 %v245
      %v304 = vpop.f32.mrf.mxu0
      %v305 = vadd.f32 %v276, %v304
      %306 = vmatmul.f32.gmra.mxu0 %v246
      %v307 = vpop.f32.mrf.mxu0
      %v308 = vadd.f32 %v276, %v307
      %309 = vmatmul.f32.gmra.mxu0 %v247
      %v310 = vpop.f32.mrf.mxu0
      %v311 = vadd.f32 %v276, %v310
      %312 = vmatmul.f32.gmra.mxu0 %v248
      %v313 = vpop.f32.mrf.mxu0
      %v314 = vadd.f32 %v276, %v313
      %315 = vmatmul.f32.gmra.mxu0 %v249
      %v316 = vpop.f32.mrf.mxu0
      %v317 = vadd.f32 %v276, %v316
      %318 = vmatmul.f32.gmra.mxu0 %v250
      %v319 = vpop.f32.mrf.mxu0
      %v320 = vadd.f32 %v276, %v319
      %321 = vmatmul.f32.gmra.mxu0 %v251
      %v322 = vpop.f32.mrf.mxu0
      %v323 = vadd.f32 %v276, %v322
      %324 = vmatmul.f32.gmra.mxu0 %v252
      %v325 = vpop.f32.mrf.mxu0
      %v326 = vadd.f32 %v276, %v325
      %327 = vmatmul.f32.gmra.mxu0 %v253
      %v328 = vpop.f32.mrf.mxu0
      %v329 = vadd.f32 %v276, %v328
      %330 = vmatmul.f32.gmra.mxu0 %v254
      %v331 = vpop.f32.mrf.mxu0
      %v332 = vadd.f32 %v276, %v331
      %333 = vmatmul.f32.gmra.mxu0 %v255
      %v334 = vpop.f32.mrf.mxu0
      %v335 = vadd.f32 %v276, %v334
      %336 = vmatmul.f32.gmra.mxu0 %v256
      %v337 = vpop.f32.mrf.mxu0
      %v338 = vadd.f32 %v276, %v337
      %339 = vmatmul.f32.gmra.mxu0 %v257
      %v340 = vpop.f32.mrf.mxu0
      %v341 = vadd.f32 %v276, %v340
      %342 = vdwg.mxu0
      %343 = vst [vmem:[%s234] sm:$0xff] %v296
      %344 = vst [vmem:[%s234 + $0x8] sm:$0xff] %v299
      %345 = vst [vmem:[%s234 + $0x10] sm:$0xff] %v302
      %346 = vst [vmem:[%s234 + $0x18] sm:$0xff] %v305
      %347 = vst [vmem:[%s234 + $0x20] sm:$0xff] %v308
      %348 = vst [vmem:[%s234 + $0x28] sm:$0xff] %v311
      %349 = vst [vmem:[%s234 + $0x30] sm:$0xff] %v314
      %350 = vst [vmem:[%s234 + $0x38] sm:$0xff] %v317
      %351 = vst [vmem:[%s234 + $0x40] sm:$0xff] %v320
      %352 = vst [vmem:[%s234 + $0x48] sm:$0xff] %v323
      %353 = vst [vmem:[%s234 + $0x50] sm:$0xff] %v326
      %354 = vst [vmem:[%s234 + $0x58] sm:$0xff] %v329
      %355 = vst [vmem:[%s234 + $0x60] sm:$0xff] %v332
      %356 = vst [vmem:[%s234 + $0x68] sm:$0xff] %v335
      %357 = vst [vmem:[%s234 + $0x70] sm:$0xff] %v338
      %358 = vst [vmem:[%s234 + $0x78] sm:$0xff] %v341
      %v359 = vld [vmem:[%s3] sm:$0xff]
      %v360 = vld [vmem:[%s3 + $0x8] sm:$0xff]
      %v361 = vld [vmem:[%s3 + $0x10] sm:$0xff]
      %v362 = vld [vmem:[%s3 + $0x18] sm:$0xff]
      %v363 = vld [vmem:[%s3 + $0x20] sm:$0xff]
      %v364 = vld [vmem:[%s3 + $0x28] sm:$0xff]
      %v365 = vld [vmem:[%s3 + $0x30] sm:$0xff]
      %v366 = vld [vmem:[%s3 + $0x38] sm:$0xff]
      %v367 = vld [vmem:[%s3 + $0x40] sm:$0xff]
      %v368 = vld [vmem:[%s3 + $0x48] sm:$0xff]
      %v369 = vld [vmem:[%s3 + $0x50] sm:$0xff]
      %v370 = vld [vmem:[%s3 + $0x58] sm:$0xff]
      %v371 = vld [vmem:[%s3 + $0x60] sm:$0xff]
      %v372 = vld [vmem:[%s3 + $0x68] sm:$0xff]
      %v373 = vld [vmem:[%s3 + $0x70] sm:$0xff]
      %v374 = vld [vmem:[%s3 + $0x78] sm:$0xff]
      %375 = vmatpush.msra.mxu0 %v374
      %376 = vmatpush.msra.mxu0 %v373
      %377 = vmatpush.msra.mxu0 %v372
      %378 = vmatpush.msra.mxu0 %v371
      %379 = vmatpush.msra.mxu0 %v370
      %380 = vmatpush.msra.mxu0 %v369
      %381 = vmatpush.msra.mxu0 %v368
      %382 = vmatpush.msra.mxu0 %v367
      %383 = vmatpush.msra.mxu0 %v366
      %384 = vmatpush.msra.mxu0 %v365
      %385 = vmatpush.msra.mxu0 %v364
      %386 = vmatpush.msra.mxu0 %v363
      %387 = vmatpush.msra.mxu0 %v362
      %388 = vmatpush.msra.mxu0 %v361
      %389 = vmatpush.msra.mxu0 %v360
      %390 = vmatpush.msra.mxu0 %v359
      %391 = vmatmul.f32.gmra.mxu0 %v296
      %v392 = vpop.f32.mrf.mxu0
      %v393 = vadd.f32 0.0, %v392
      %394 = vmatmul.f32.gmra.mxu0 %v299
      %v395 = vpop.f32.mrf.mxu0
      %v396 = vadd.f32 0.0, %v395
      %397 = vmatmul.f32.gmra.mxu0 %v302
      %v398 = vpop.f32.mrf.mxu0
      %v399 = vadd.f32 0.0, %v398
      %400 = vmatmul.f32.gmra.mxu0 %v305
      %v401 = vpop.f32.mrf.mxu0
      %v402 = vadd.f32 0.0, %v401
      %403 = vmatmul.f32.gmra.mxu0 %v308
      %v404 = vpop.f32.mrf.mxu0
      %v405 = vadd.f32 0.0, %v404
      %406 = vmatmul.f32.gmra.mxu0 %v311
      %v407 = vpop.f32.mrf.mxu0
      %v408 = vadd.f32 0.0, %v407
      %409 = vmatmul.f32.gmra.mxu0 %v314
      %v410 = vpop.f32.mrf.mxu0
      %v411 = vadd.f32 0.0, %v410
      %412 = vmatmul.f32.gmra.mxu0 %v317
      %v413 = vpop.f32.mrf.mxu0
      %v414 = vadd.f32 0.0, %v413
      %415 = vmatmul.f32.gmra.mxu0 %v320
      %v416 = vpop.f32.mrf.mxu0
      %v417 = vadd.f32 0.0, %v416
      %418 = vmatmul.f32.gmra.mxu0 %v323
      %v419 = vpop.f32.mrf.mxu0
      %v420 = vadd.f32 0.0, %v419
      %421 = vmatmul.f32.gmra.mxu0 %v326
      %v422 = vpop.f32.mrf.mxu0
      %v423 = vadd.f32 0.0, %v422
      %424 = vmatmul.f32.gmra.mxu0 %v329
      %v425 = vpop.f32.mrf.mxu0
      %v426 = vadd.f32 0.0, %v425
      %427 = vmatmul.f32.gmra.mxu0 %v332
      %v428 = vpop.f32.mrf.mxu0
      %v429 = vadd.f32 0.0, %v428
      %430 = vmatmul.f32.gmra.mxu0 %v335
      %v431 = vpop.f32.mrf.mxu0
      %v432 = vadd.f32 0.0, %v431
      %433 = vmatmul.f32.gmra.mxu0 %v338
      %v434 = vpop.f32.mrf.mxu0
      %v435 = vadd.f32 0.0, %v434
      %436 = vmatmul.f32.gmra.mxu0 %v341
      %v437 = vpop.f32.mrf.mxu0
      %v438 = vadd.f32 0.0, %v437
      %439 = vdwg.mxu0
      %440 = vst [vmem:[%s240] sm:$0xff] %v393
      %441 = vst [vmem:[%s240 + $0x8] sm:$0xff] %v396
      %442 = vst [vmem:[%s240 + $0x10] sm:$0xff] %v399
      %443 = vst [vmem:[%s240 + $0x18] sm:$0xff] %v402
      %444 = vst [vmem:[%s240 + $0x20] sm:$0xff] %v405
      %445 = vst [vmem:[%s240 + $0x28] sm:$0xff] %v408
      %446 = vst [vmem:[%s240 + $0x30] sm:$0xff] %v411
      %447 = vst [vmem:[%s240 + $0x38] sm:$0xff] %v414
      %448 = vst [vmem:[%s240 + $0x40] sm:$0xff] %v417
      %449 = vst [vmem:[%s240 + $0x48] sm:$0xff] %v420
      %450 = vst [vmem:[%s240 + $0x50] sm:$0xff] %v423
      %451 = vst [vmem:[%s240 + $0x58] sm:$0xff] %v426
      %452 = vst [vmem:[%s240 + $0x60] sm:$0xff] %v429
      %453 = vst [vmem:[%s240 + $0x68] sm:$0xff] %v432
      %454 = vst [vmem:[%s240 + $0x70] sm:$0xff] %v435
      %455 = vst [vmem:[%s240 + $0x78] sm:$0xff] %v438
      %s456 = smul.u32 16, %s17
      %p457 = scmp.lt.s32.totalorder %s456, 31
      %s458 = scalar_select %p457, %s456, 31
      %s459 = smul.addr %s458, 8
      %s460 = scalar_lea.vmem %s4, %s459
      %s461 = smul.u32 16, %s17
      %p462 = scmp.lt.s32.totalorder %s461, 31
      %s463 = scalar_select %p462, %s461, 31
      %s464 = smul.addr %s463, 8
      %s465 = scalar_lea.vmem %s5, %s464
      // Predicated region
      $region37: #{own_gat_conv_forward.2} parent=35 // pred_check
        %p466 = pneg %p124
      $region38: #{own_gat_conv_forward.2} parent=35 // pred_check_branch
        %468 = sbr.rel (%p466) target = $region40
      $region39: #{own_gat_conv_forward.2} parent=35 // pred_region
        %s469 = smul.u32 16, %s17
      $region40: #{own_gat_conv_forward.2} parent=35 // pred_fallthru
        _
      // Predicated region
      $region41: #{own_gat_conv_forward.2} parent=35 // pred_check
        %p470 = pneg %p150
      $region42: #{own_gat_conv_forward.2} parent=35 // pred_check_branch
        %472 = sbr.rel (%p470) target = $region44
      $region43: #{own_gat_conv_forward.2} parent=35 // pred_region
        %s473 = smul.u32 16, %s17
      $region44: #{own_gat_conv_forward.2} parent=35 // pred_fallthru
        _
    $region36: #{own_gat_conv_forward.2} parent=5 // pred_fallthru
      _
    %p474 = scmp.le.s32.totalorder 2, %s12
    // Predicated region
    $region45: #{own_gat_conv_forward.2} parent=5 // pred_check
      %p475 = pneg %p474
    $region46: #{own_gat_conv_forward.2} parent=5 // pred_check_branch
      %477 = sbr.rel (%p475) target = $region48
    $region47: #{own_gat_conv_forward.2} parent=5 // pred_region
      %s478 = ssub.s32 %s12, 2
      // Predicated region
      $region49: #{own_gat_conv_forward.2} parent=47 // pred_check
        %p479 = pneg %p130
      $region50: #{own_gat_conv_forward.2} parent=47 // pred_check_branch
        %481 = sbr.rel (%p479) target = $region52
      $region51: #{own_gat_conv_forward.2} parent=47 // pred_region
        %s482 = smul.u32 16, %s18
        %p483 = scmp.lt.s32.totalorder %s482, 31
        %s484 = scalar_select %p483, %s482, 31
        %s485 = smul.addr %s484, 8
        %s486 = scalar_lea.vmem %s4, %s485
      $region52: #{own_gat_conv_forward.2} parent=47 // pred_fallthru
        _
      // Predicated region
      $region53: #{own_gat_conv_forward.2} parent=47 // pred_check
        %p487 = pneg %p156
      $region54: #{own_gat_conv_forward.2} parent=47 // pred_check_branch
        %489 = sbr.rel (%p487) target = $region56
      $region55: #{own_gat_conv_forward.2} parent=47 // pred_region
        %s490 = smul.u32 16, %s18
        %p491 = scmp.lt.s32.totalorder %s490, 31
        %s492 = scalar_select %p491, %s490, 31
        %s493 = smul.addr %s492, 8
        %s494 = scalar_lea.vmem %s5, %s493
      $region56: #{own_gat_conv_forward.2} parent=47 // pred_fallthru
        _
    $region48: #{own_gat_conv_forward.2} parent=5 // pred_fallthru
      _
  $region6: #{own_gat_conv_forward.2} parent=0 // loop_footer
    %s16 = sadd.s32 1, %s12
  $region7: #{own_gat_conv_forward.2} parent=0 // loop_footer_branch
    %11 = sbr.rel target = $region3
  $region8: #{own_gat_conv_forward.2} parent=0 // loop_exit
    _

// kernel: own_gat_conv_forward.3
$region0: #{own_gat_conv_forward.3}
  #allocation0 [shape = 'u32[]', space=smem, size = 0x4, offset = 0x4, fixed_abs, tag = 'smem constant byte address 0x4 - core index']
  #allocation1 [shape = 'u32[72,128]{1,0:T(1,128)}', space=vmem, size = 0x9000, scoped, tag = 'internal scratch']
  %s0 = inlined_call_operand.vmem [shape: s8[256,256], index: 0, kind: input, shape index: {}]
  %s1 = inlined_call_operand.vmem [shape: f32[256,128], index: 1, kind: input, shape index: {}]
  %s2 = inlined_call_operand.vmem [shape: f32[1,256], index: 2, kind: input, shape index: {}]
  %s3 = inlined_call_operand.vmem [shape: f32[1,256], index: 3, kind: input, shape index: {}]
  %s4 = inlined_call_operand.vmem [shape: f32[256,128], index: 4, kind: input, shape index: {}]
  %s5 = inlined_call_operand.vmem [shape: f32[256,128], index: 5, kind: output, shape index: {}]
  %s6 = sld [smem:[#allocation0]]
  $region53: #{own_gat_conv_forward.3} parent=0
    _
  %s8 = ssub.s32 1, %s6
  %s9 = scalar_select 0, %s8, %s6
  loop: start=0, step=1, limit=4
  $region2: #{own_gat_conv_forward.3} parent=0 // loop_pre_header
    _
  $region3: #{own_gat_conv_forward.3} parent=0 // loop_header
    %s11 = sphi 0, %s15
    %p12 = scmp.ge.s32.totalorder %s11, 4
    %s21 = sphi 0, %s23
    %s24 = sphi 0, %s21
    %s25 = sphi 0, %s24
    %s41 = sphi 0, %s25
    %s47 = sphi 0, %s49
    %s50 = sphi 0, %s47
    %s51 = sphi 0, %s50
    %s67 = sphi 0, %s51
    %s71 = sphi 0, %s71
    %s73 = sphi 0, %s71
    %s74 = sphi 0, %s73
    %s88 = sphi 0, %s74
    %s92 = sphi 0, %s92
    %s94 = sphi 0, %s92
    %s95 = sphi 0, %s94
    %s109 = sphi 0, %s95
    %s113 = sphi 0, %s113
    %s115 = sphi 0, %s113
    %s116 = sphi 0, %s115
    %s130 = sphi 0, %s116
    %s136 = sphi 0, %s138
    %s139 = sphi 0, %s136
    %s140 = sphi 0, %s139
    %s156 = sphi 0, %s140
  $region4: #{own_gat_conv_forward.3} parent=0 // loop_header_branch
    %14 = sbr.rel (%p12) target = $region8
  $region5: #{own_gat_conv_forward.3} parent=0 // loop_body
    %s16 = ssub.s32 %s11, 1
    %s17 = ssub.s32 %s11, 2
    %s18 = sadd.s32 %s11, 1
    %s19 = ssub.s32 %s11, %s18
    %p20 = scmp.eq.s32.totalorder %s19, 0
    %s22 = sadd.s32 %s21, 1
    %s23 = scalar_select %p20, %s21, %s22
    %p26 = pneg %p20
    %p27 = scmp.eq.s32.totalorder %s11, 1
    %p28 = por %p26, %p27
    %p29 = scmp.ne.s32.totalorder %s21, %s24
    %p30 = scmp.eq.s32.totalorder %s11, 0
    %p31 = por %p29, %p30
    %p32 = scmp.ne.s32.totalorder %s21, %s24
    %p33 = scmp.eq.s32.totalorder %s16, 1
    %p34 = por %p32, %p33
    %p35 = scmp.ne.s32.totalorder %s24, %s25
    %p36 = scmp.eq.s32.totalorder %s16, 0
    %p37 = por %p35, %p36
    %p38 = scmp.ne.s32.totalorder %s24, %s25
    %p39 = scmp.eq.s32.totalorder %s17, 1
    %p40 = por %p38, %p39
    %p42 = scmp.ne.s32.totalorder %s25, %s41
    %p43 = scmp.eq.s32.totalorder %s17, 0
    %p44 = por %p42, %p43
    %s45 = ssub.s32 %s11, %s18
    %p46 = scmp.eq.s32.totalorder %s45, 0
    %s48 = sadd.s32 %s47, 1
    %s49 = scalar_select %p46, %s47, %s48
    %p52 = pneg %p46
    %p53 = scmp.eq.s32.totalorder %s11, 1
    %p54 = por %p52, %p53
    %p55 = scmp.ne.s32.totalorder %s47, %s50
    %p56 = scmp.eq.s32.totalorder %s11, 0
    %p57 = por %p55, %p56
    %p58 = scmp.ne.s32.totalorder %s47, %s50
    %p59 = scmp.eq.s32.totalorder %s16, 1
    %p60 = por %p58, %p59
    %p61 = scmp.ne.s32.totalorder %s50, %s51
    %p62 = scmp.eq.s32.totalorder %s16, 0
    %p63 = por %p61, %p62
    %p64 = scmp.ne.s32.totalorder %s50, %s51
    %p65 = scmp.eq.s32.totalorder %s17, 1
    %p66 = por %p64, %p65
    %p68 = scmp.ne.s32.totalorder %s51, %s67
    %p69 = scmp.eq.s32.totalorder %s17, 0
    %p70 = por %p68, %p69
    %s72 = sadd.s32 %s71, 1
    %p75 = scmp.eq.s32.totalorder %s11, 1
    %p76 = scmp.ne.s32.totalorder %s71, %s73
    %p77 = scmp.eq.s32.totalorder %s11, 0
    %p78 = por %p76, %p77
    %p79 = scmp.ne.s32.totalorder %s71, %s73
    %p80 = scmp.eq.s32.totalorder %s16, 1
    %p81 = por %p79, %p80
    %p82 = scmp.ne.s32.totalorder %s73, %s74
    %p83 = scmp.eq.s32.totalorder %s16, 0
    %p84 = por %p82, %p83
    %p85 = scmp.ne.s32.totalorder %s73, %s74
    %p86 = scmp.eq.s32.totalorder %s17, 1
    %p87 = por %p85, %p86
    %p89 = scmp.ne.s32.totalorder %s74, %s88
    %p90 = scmp.eq.s32.totalorder %s17, 0
    %p91 = por %p89, %p90
    %s93 = sadd.s32 %s92, 1
    %p96 = scmp.eq.s32.totalorder %s11, 1
    %p97 = scmp.ne.s32.totalorder %s92, %s94
    %p98 = scmp.eq.s32.totalorder %s11, 0
    %p99 = por %p97, %p98
    %p100 = scmp.ne.s32.totalorder %s92, %s94
    %p101 = scmp.eq.s32.totalorder %s16, 1
    %p102 = por %p100, %p101
    %p103 = scmp.ne.s32.totalorder %s94, %s95
    %p104 = scmp.eq.s32.totalorder %s16, 0
    %p105 = por %p103, %p104
    %p106 = scmp.ne.s32.totalorder %s94, %s95
    %p107 = scmp.eq.s32.totalorder %s17, 1
    %p108 = por %p106, %p107
    %p110 = scmp.ne.s32.totalorder %s95, %s109
    %p111 = scmp.eq.s32.totalorder %s17, 0
    %p112 = por %p110, %p111
    %s114 = sadd.s32 %s113, 1
    %p117 = scmp.eq.s32.totalorder %s11, 1
    %p118 = scmp.ne.s32.totalorder %s113, %s115
    %p119 = scmp.eq.s32.totalorder %s11, 0
    %p120 = por %p118, %p119
    %p121 = scmp.ne.s32.totalorder %s113, %s115
    %p122 = scmp.eq.s32.totalorder %s16, 1
    %p123 = por %p121, %p122
    %p124 = scmp.ne.s32.totalorder %s115, %s116
    %p125 = scmp.eq.s32.totalorder %s16, 0
    %p126 = por %p124, %p125
    %p127 = scmp.ne.s32.totalorder %s115, %s116
    %p128 = scmp.eq.s32.totalorder %s17, 1
    %p129 = por %p127, %p128
    %p131 = scmp.ne.s32.totalorder %s116, %s130
    %p132 = scmp.eq.s32.totalorder %s17, 0
    %p133 = por %p131, %p132
    %s134 = ssub.s32 %s11, %s18
    %p135 = scmp.eq.s32.totalorder %s134, 0
    %s137 = sadd.s32 %s136, 1
    %s138 = scalar_select %p135, %s136, %s137
    %p141 = pneg %p135
    %p142 = scmp.eq.s32.totalorder %s11, 1
    %p143 = por %p141, %p142
    %p144 = scmp.ne.s32.totalorder %s136, %s139
    %p145 = scmp.eq.s32.totalorder %s11, 0
    %p146 = por %p144, %p145
    %p147 = scmp.ne.s32.totalorder %s136, %s139
    %p148 = scmp.eq.s32.totalorder %s16, 1
    %p149 = por %p147, %p148
    %p150 = scmp.ne.s32.totalorder %s139, %s140
    %p151 = scmp.eq.s32.totalorder %s16, 0
    %p152 = por %p150, %p151
    %p153 = scmp.ne.s32.totalorder %s139, %s140
    %p154 = scmp.eq.s32.totalorder %s17, 1
    %p155 = por %p153, %p154
    %p157 = scmp.ne.s32.totalorder %s140, %s156
    %p158 = scmp.eq.s32.totalorder %s17, 0
    %p159 = por %p157, %p158
    %p160 = scmp.le.s32.totalorder 1, %s11
    %p161 = scmp.lt.s32.totalorder %s11, 3
    %p162 = pnand %p160, %p161
    %p163 = pneg %p162
    // Predicated region
    $region9: #{own_gat_conv_forward.3} parent=5 // pred_check
      _
    $region10: #{own_gat_conv_forward.3} parent=5 // pred_check_branch
      %165 = sbr.rel (%p162) target = $region12
    $region11: #{own_gat_conv_forward.3} parent=5 // pred_region
      %s166 = ssub.s32 %s11, 1
      // Predicated region
      $region13: #{own_gat_conv_forward.3} parent=11 // pred_check
        %p167 = pneg %p84
      $region14: #{own_gat_conv_forward.3} parent=11 // pred_check_branch
        %169 = sbr.rel (%p167) target = $region16
      $region15: #{own_gat_conv_forward.3} parent=11 // pred_region
        _
      $region16: #{own_gat_conv_forward.3} parent=11 // pred_fallthru
        _
      // Predicated region
      $region17: #{own_gat_conv_forward.3} parent=11 // pred_check
        %p170 = pneg %p105
      $region18: #{own_gat_conv_forward.3} parent=11 // pred_check_branch
        %172 = sbr.rel (%p170) target = $region20
      $region19: #{own_gat_conv_forward.3} parent=11 // pred_region
        _
      $region20: #{own_gat_conv_forward.3} parent=11 // pred_fallthru
        _
      // Predicated region
      $region21: #{own_gat_conv_forward.3} parent=11 // pred_check
        %p173 = pneg %p126
      $region22: #{own_gat_conv_forward.3} parent=11 // pred_check_branch
        %175 = sbr.rel (%p173) target = $region24
      $region23: #{own_gat_conv_forward.3} parent=11 // pred_region
        _
      $region24: #{own_gat_conv_forward.3} parent=11 // pred_fallthru
        _
    $region12: #{own_gat_conv_forward.3} parent=5 // pred_fallthru
      _
    %p176 = scmp.lt.s32.totalorder %s11, 2
    // Predicated region
    $region25: #{own_gat_conv_forward.3} parent=5 // pred_check
      %p177 = pneg %p176
    $region26: #{own_gat_conv_forward.3} parent=5 // pred_check_branch
      %179 = sbr.rel (%p177) target = $region28
    $region27: #{own_gat_conv_forward.3} parent=5 // pred_region
      // Predicated region
      $region29: #{own_gat_conv_forward.3} parent=27 // pred_check
        %p180 = pneg %p31
      $region30: #{own_gat_conv_forward.3} parent=27 // pred_check_branch
        %182 = sbr.rel (%p180) target = $region32
      $region31: #{own_gat_conv_forward.3} parent=27 // pred_region
        %s183 = smul.u32 4, %s11
        %p184 = scmp.lt.s32.totalorder %s183, 7
        %s185 = scalar_select %p184, %s183, 7
        %s186 = smul.addr %s185, 2
        %s187 = smul.addr %s186, 8
        %s188 = scalar_lea.vmem %s0, %s187
        %s189 = smul.u32 4, %s11
      $region32: #{own_gat_conv_forward.3} parent=27 // pred_fallthru
        _
      // Predicated region
      $region33: #{own_gat_conv_forward.3} parent=27 // pred_check
        %p190 = pneg %p57
      $region34: #{own_gat_conv_forward.3} parent=27 // pred_check_branch
        %192 = sbr.rel (%p190) target = $region36
      $region35: #{own_gat_conv_forward.3} parent=27 // pred_region
        %s193 = smul.u32 16, %s11
        %p194 = scmp.lt.s32.totalorder %s193, 31
        %s195 = scalar_select %p194, %s193, 31
        %s196 = smul.addr %s195, 8
        %s197 = scalar_lea.vmem %s1, %s196
        %s198 = smul.u32 16, %s11
      $region36: #{own_gat_conv_forward.3} parent=27 // pred_fallthru
        _
    $region28: #{own_gat_conv_forward.3} parent=5 // pred_fallthru
      _
    %p199 = scmp.le.s32.totalorder 1, %s11
    %p200 = scmp.lt.s32.totalorder %s11, 3
    %p201 = pnand %p199, %p200
    %p202 = pneg %p201
    // Predicated region
    $region37: #{own_gat_conv_forward.3} parent=5 // pred_check
      _
    $region38: #{own_gat_conv_forward.3} parent=5 // pred_check_branch
      %204 = sbr.rel (%p201) target = $region40
    $region39: #{own_gat_conv_forward.3} parent=5 // pred_region
      %s205 = ssub.s32 %s11, 1
      %s206 = smul.u32 4, %s16
      %p207 = scmp.lt.s32.totalorder %s206, 7
      %s208 = scalar_select %p207, %s206, 7
      %s209 = smul.addr %s208, 2
      %s210 = smul.addr %s209, 8
      %s211 = scalar_lea.vmem %s0, %s210
      %p212 = pneg %p37
      %p213 = pneg %p34
      %s214 = smul.u32 16, %s16
      %p215 = scmp.lt.s32.totalorder %s214, 31
      %s216 = scalar_select %p215, %s214, 31
      %s217 = smul.addr %s216, 8
      %s218 = scalar_lea.vmem %s1, %s217
      %p219 = pneg %p63
      %p220 = pneg %p60
      %p221 = pneg %p84
      %p222 = pneg %p81
      %p223 = pneg %p105
      %p224 = pneg %p102
      %p225 = pneg %p126
      %p226 = pneg %p123
      %p227 = pneg %p152
      %p228 = pneg %p149
      %s229 = smul.u32 16, %s16
      %p230 = scmp.lt.s32.totalorder %s229, 31
      %s231 = scalar_select %p230, %s229, 31
      %s232 = smul.addr %s231, 8
      %s233 = scalar_lea.vmem %s5, %s232
      %s234 = smul.u32 4, %s16
      %p235 = scmp.lt.s32.totalorder %s234, 7
      %s236 = scalar_select %p235, %s234, 7
      %s237 = smul.addr %s236, 2
      %s238 = smul.addr %s237, 8
      %s239 = scalar_lea.vmem %s0, %s238
      %s240 = smul.u32 4, %s16
      %s241 = smul.u32 16, %s16
      %p242 = scmp.lt.s32.totalorder %s241, 31
      %s243 = scalar_select %p242, %s241, 31
      %s244 = smul.addr %s243, 8
      %s245 = scalar_lea.vmem %s1, %s244
      %s246 = smul.u32 16, %s16
      %s247 = smul.u32 16, %s16
      %p248 = scmp.lt.s32.totalorder %s247, 31
      %s249 = scalar_select %p248, %s247, 31
      %s250 = smul.addr %s249, 8
      %s251 = scalar_lea.vmem %s5, %s250
      %s252 = smul.u32 16, %s16
      %v255 = vld [vmem:[%s245] sm:$0xff]
      %v256 = vld [vmem:[%s245 + $0x8] sm:$0xff]
      %v257 = vld [vmem:[%s245 + $0x10] sm:$0xff]
      %v258 = vld [vmem:[%s245 + $0x18] sm:$0xff]
      %v259 = vld [vmem:[%s245 + $0x20] sm:$0xff]
      %v260 = vld [vmem:[%s245 + $0x28] sm:$0xff]
      %v261 = vld [vmem:[%s245 + $0x30] sm:$0xff]
      %v262 = vld [vmem:[%s245 + $0x38] sm:$0xff]
      %v263 = vld [vmem:[%s245 + $0x40] sm:$0xff]
      %v264 = vld [vmem:[%s245 + $0x48] sm:$0xff]
      %v265 = vld [vmem:[%s245 + $0x50] sm:$0xff]
      %v266 = vld [vmem:[%s245 + $0x58] sm:$0xff]
      %v267 = vld [vmem:[%s245 + $0x60] sm:$0xff]
      %v268 = vld [vmem:[%s245 + $0x68] sm:$0xff]
      %v269 = vld [vmem:[%s245 + $0x70] sm:$0xff]
      %v270 = vld [vmem:[%s245 + $0x78] sm:$0xff]
      %v271 = vld [vmem:[%s2] sm:$0x3]
      %273 = vset.pattern.permute.xlu0 0
      %274 = vperm.xlu0 %273, %v255
      %v275 = vpop.permute.xlu0 %274
      %278 = vset.pattern.permute.xlu0 0
      %279 = vperm.xlu0 %278, %v256
      %v280 = vpop.permute.xlu0 %279
      %283 = vset.pattern.permute.xlu0 0
      %284 = vperm.xlu0 %283, %v257
      %v285 = vpop.permute.xlu0 %284
      %288 = vset.pattern.permute.xlu0 0
      %289 = vperm.xlu0 %288, %v258
      %v290 = vpop.permute.xlu0 %289
      %293 = vset.pattern.permute.xlu0 0
      %294 = vperm.xlu0 %293, %v259
      %v295 = vpop.permute.xlu0 %294
      %298 = vset.pattern.permute.xlu0 0
      %299 = vperm.xlu0 %298, %v260
      %v300 = vpop.permute.xlu0 %299
      %303 = vset.pattern.permute.xlu0 0
      %304 = vperm.xlu0 %303, %v261
      %v305 = vpop.permute.xlu0 %304
      %308 = vset.pattern.permute.xlu0 0
      %309 = vperm.xlu0 %308, %v262
      %v310 = vpop.permute.xlu0 %309
      %313 = vset.pattern.permute.xlu0 0
      %314 = vperm.xlu0 %313, %v263
      %v315 = vpop.permute.xlu0 %314
      %318 = vset.pattern.permute.xlu0 0
      %319 = vperm.xlu0 %318, %v264
      %v320 = vpop.permute.xlu0 %319
      %323 = vset.pattern.permute.xlu0 0
      %324 = vperm.xlu0 %323, %v265
      %v325 = vpop.permute.xlu0 %324
      %328 = vset.pattern.permute.xlu0 0
      %329 = vperm.xlu0 %328, %v266
      %v330 = vpop.permute.xlu0 %329
      %333 = vset.pattern.permute.xlu0 0
      %334 = vperm.xlu0 %333, %v267
      %v335 = vpop.permute.xlu0 %334
      %338 = vset.pattern.permute.xlu0 0
      %339 = vperm.xlu0 %338, %v268
      %v340 = vpop.permute.xlu0 %339
      %343 = vset.pattern.permute.xlu0 0
      %344 = vperm.xlu0 %343, %v269
      %v345 = vpop.permute.xlu0 %344
      %348 = vset.pattern.permute.xlu0 0
      %349 = vperm.xlu0 %348, %v270
      %v350 = vpop.permute.xlu0 %349
      %v353 = vperm.slane %v271, 0
      %v354 = vperm.slane %v271, 1
      %v357 = vadd.f32 %v275, %v353
      %v358 = vadd.f32 %v275, %v354
      %v359 = vadd.f32 %v280, %v353
      %v360 = vadd.f32 %v280, %v354
      %v361 = vadd.f32 %v285, %v353
      %v362 = vadd.f32 %v285, %v354
      %v363 = vadd.f32 %v290, %v353
      %v364 = vadd.f32 %v290, %v354
      %v365 = vadd.f32 %v295, %v353
      %v366 = vadd.f32 %v295, %v354
      %v367 = vadd.f32 %v300, %v353
      %v368 = vadd.f32 %v300, %v354
      %v369 = vadd.f32 %v305, %v353
      %v370 = vadd.f32 %v305, %v354
      %v371 = vadd.f32 %v310, %v353
      %v372 = vadd.f32 %v310, %v354
      %v373 = vadd.f32 %v315, %v353
      %v374 = vadd.f32 %v315, %v354
      %v375 = vadd.f32 %v320, %v353
      %v376 = vadd.f32 %v320, %v354
      %v377 = vadd.f32 %v325, %v353
      %v378 = vadd.f32 %v325, %v354
      %v379 = vadd.f32 %v330, %v353
      %v380 = vadd.f32 %v330, %v354
      %v381 = vadd.f32 %v335, %v353
      %v382 = vadd.f32 %v335, %v354
      %v383 = vadd.f32 %v340, %v353
      %v384 = vadd.f32 %v340, %v354
      %v385 = vadd.f32 %v345, %v353
      %v386 = vadd.f32 %v345, %v354
      %v387 = vadd.f32 %v350, %v353
      %v388 = vadd.f32 %v350, %v354
      %v389 = vmul.f32 %v357, 0.2
      %v390 = vmul.f32 %v358, 0.2
      %v391 = vmul.f32 %v359, 0.2
      %v392 = vmul.f32 %v360, 0.2
      %v393 = vmul.f32 %v361, 0.2
      %v394 = vmul.f32 %v362, 0.2
      %v395 = vmul.f32 %v363, 0.2
      %v396 = vmul.f32 %v364, 0.2
      %v397 = vmul.f32 %v365, 0.2
      %v398 = vmul.f32 %v366, 0.2
      %v399 = vmul.f32 %v367, 0.2
      %v400 = vmul.f32 %v368, 0.2
      %v401 = vmul.f32 %v369, 0.2
      %v402 = vmul.f32 %v370, 0.2
      %v403 = vmul.f32 %v371, 0.2
      %v404 = vmul.f32 %v372, 0.2
      %v405 = vmul.f32 %v373, 0.2
      %v406 = vmul.f32 %v374, 0.2
      %v407 = vmul.f32 %v375, 0.2
      %v408 = vmul.f32 %v376, 0.2
      %v409 = vmul.f32 %v377, 0.2
      %v410 = vmul.f32 %v378, 0.2
      %v411 = vmul.f32 %v379, 0.2
      %v412 = vmul.f32 %v380, 0.2
      %v413 = vmul.f32 %v381, 0.2
      %v414 = vmul.f32 %v382, 0.2
      %v415 = vmul.f32 %v383, 0.2
      %v416 = vmul.f32 %v384, 0.2
      %v417 = vmul.f32 %v385, 0.2
      %v418 = vmul.f32 %v386, 0.2
      %v419 = vmul.f32 %v387, 0.2
      %v420 = vmul.f32 %v388, 0.2
      %v421 = vmax.f32 %v357, %v389
      %v422 = vmax.f32 %v358, %v390
      %v423 = vmax.f32 %v359, %v391
      %v424 = vmax.f32 %v360, %v392
      %v425 = vmax.f32 %v361, %v393
      %v426 = vmax.f32 %v362, %v394
      %v427 = vmax.f32 %v363, %v395
      %v428 = vmax.f32 %v364, %v396
      %v429 = vmax.f32 %v365, %v397
      %v430 = vmax.f32 %v366, %v398
      %v431 = vmax.f32 %v367, %v399
      %v432 = vmax.f32 %v368, %v400
      %v433 = vmax.f32 %v369, %v401
      %v434 = vmax.f32 %v370, %v402
      %v435 = vmax.f32 %v371, %v403
      %v436 = vmax.f32 %v372, %v404
      %v437 = vmax.f32 %v373, %v405
      %v438 = vmax.f32 %v374, %v406
      %v439 = vmax.f32 %v375, %v407
      %v440 = vmax.f32 %v376, %v408
      %v441 = vmax.f32 %v377, %v409
      %v442 = vmax.f32 %v378, %v410
      %v443 = vmax.f32 %v379, %v411
      %v444 = vmax.f32 %v380, %v412
      %v445 = vmax.f32 %v381, %v413
      %v446 = vmax.f32 %v382, %v414
      %v447 = vmax.f32 %v383, %v415
      %v448 = vmax.f32 %v384, %v416
      %v449 = vmax.f32 %v385, %v417
      %v450 = vmax.f32 %v386, %v418
      %v451 = vmax.f32 %v387, %v419
      %v452 = vmax.f32 %v388, %v420
      %v453 = vld [vmem:[%s239] sm:$0xff]
      %v454 = vld [vmem:[%s239 + $0x8] sm:$0xff]
      %v455 = vld [vmem:[%s239 + $0x10] sm:$0xff]
      %v456 = vld [vmem:[%s239 + $0x18] sm:$0xff]
      %v457 = vld [vmem:[%s239 + $0x20] sm:$0xff]
      %v458 = vld [vmem:[%s239 + $0x28] sm:$0xff]
      %v459 = vld [vmem:[%s239 + $0x30] sm:$0xff]
      %v460 = vld [vmem:[%s239 + $0x38] sm:$0xff]
      %vm461 = vnez %v453
      %vm462 = vnez %v454
      %vm463 = vnez %v455
      %vm464 = vnez %v456
      %vm465 = vnez %v457
      %vm466 = vnez %v458
      %vm467 = vnez %v459
      %vm468 = vnez %v460
      %v469 = vld [vmem:[%s3] sm:$0x3]
      %v471 = vperm.slane %v469, 0
      %v472 = vperm.slane %v469, 1
      %v475 = vsel %vm461, 16843009, 0
      %v476 = vsel %vm462, 16843009, 0
      %v477 = vsel %vm463, 16843009, 0
      %v478 = vsel %vm464, 16843009, 0
      %v479 = vsel %vm465, 16843009, 0
      %v480 = vsel %vm466, 16843009, 0
      %v481 = vsel %vm467, 16843009, 0
      %v482 = vsel %vm468, 16843009, 0
      %v483 = vunpack.c.0.s8 %v475
      %v484 = vunpack.c.0.s8 %v476
      %v485 = vunpack.c.1.s8 %v475
      %v486 = vunpack.c.1.s8 %v476
      %v487 = vunpack.c.2.s8 %v475
      %v488 = vunpack.c.2.s8 %v476
      %v489 = vunpack.c.3.s8 %v475
      %v490 = vunpack.c.3.s8 %v476
      %v491 = vunpack.c.0.s8 %v477
      %v492 = vunpack.c.0.s8 %v478
      %v493 = vunpack.c.1.s8 %v477
      %v494 = vunpack.c.1.s8 %v478
      %v495 = vunpack.c.2.s8 %v477
      %v496 = vunpack.c.2.s8 %v478
      %v497 = vunpack.c.3.s8 %v477
      %v498 = vunpack.c.3.s8 %v478
      %v499 = vunpack.c.0.s8 %v479
      %v500 = vunpack.c.0.s8 %v480
      %v501 = vunpack.c.1.s8 %v479
      %v502 = vunpack.c.1.s8 %v480
      %v503 = vunpack.c.2.s8 %v479
      %v504 = vunpack.c.2.s8 %v480
      %v505 = vunpack.c.3.s8 %v479
      %v506 = vunpack.c.3.s8 %v480
      %v507 = vunpack.c.0.s8 %v481
      %v508 = vunpack.c.0.s8 %v482
      %v509 = vunpack.c.1.s8 %v481
      %v510 = vunpack.c.1.s8 %v482
      %v511 = vunpack.c.2.s8 %v481
      %v512 = vunpack.c.2.s8 %v482
      %v513 = vunpack.c.3.s8 %v481
      %v514 = vunpack.c.3.s8 %v482
      %v515 = vpack.c.b16 %v484, %v483
      %v516 = vpack.c.b8 %v515, %v515
      %v517 = vpack.c.b16 %v486, %v485
      %v518 = vpack.c.b8 %v517, %v517
      %v519 = vpack.c.b16 %v488, %v487
      %v520 = vpack.c.b8 %v519, %v519
      %v521 = vpack.c.b16 %v490, %v489
      %v522 = vpack.c.b8 %v521, %v521
      %v523 = vpack.c.b16 %v492, %v491
      %v524 = vpack.c.b8 %v523, %v523
      %v525 = vpack.c.b16 %v494, %v493
      %v526 = vpack.c.b8 %v525, %v525
      %v527 = vpack.c.b16 %v496, %v495
      %v528 = vpack.c.b8 %v527, %v527
      %v529 = vpack.c.b16 %v498, %v497
      %v530 = vpack.c.b8 %v529, %v529
      %v531 = vpack.c.b16 %v500, %v499
      %v532 = vpack.c.b8 %v531, %v531
      %v533 = vpack.c.b16 %v502, %v501
      %v534 = vpack.c.b8 %v533, %v533
      %v535 = vpack.c.b16 %v504, %v503
      %v536 = vpack.c.b8 %v535, %v535
      %v537 = vpack.c.b16 %v506, %v505
      %v538 = vpack.c.b8 %v537, %v537
      %v539 = vpack.c.b16 %v508, %v507
      %v540 = vpack.c.b8 %v539, %v539
      %v541 = vpack.c.b16 %v510, %v509
      %v542 = vpack.c.b8 %v541, %v541
      %v543 = vpack.c.b16 %v512, %v511
      %v544 = vpack.c.b8 %v543, %v543
      %v545 = vpack.c.b16 %v514, %v513
      %v546 = vpack.c.b8 %v545, %v545
      %vm547 = vnez %v516
      %vm548 = vnez %v518
      %vm549 = vnez %v520
      %vm550 = vnez %v522
      %vm551 = vnez %v524
      %vm552 = vnez %v526
      %vm553 = vnez %v528
      %vm554 = vnez %v530
      %vm555 = vnez %v532
      %vm556 = vnez %v534
      %vm557 = vnez %v536
      %vm558 = vnez %v538
      %vm559 = vnez %v540
      %vm560 = vnez %v542
      %vm561 = vnez %v544
      %vm562 = vnez %v546
      %v563 = vsel %vm547, 16843009, 0
      %v564 = vsel %vm548, 16843009, 0
      %v565 = vsel %vm549, 16843009, 0
      %v566 = vsel %vm550, 16843009, 0
      %v567 = vsel %vm551, 16843009, 0
      %v568 = vsel %vm552, 16843009, 0
      %v569 = vsel %vm553, 16843009, 0
      %v570 = vsel %vm554, 16843009, 0
      %v571 = vsel %vm555, 16843009, 0
      %v572 = vsel %vm556, 16843009, 0
      %v573 = vsel %vm557, 16843009, 0
      %v574 = vsel %vm558, 16843009, 0
      %v575 = vsel %vm559, 16843009, 0
      %v576 = vsel %vm560, 16843009, 0
      %v577 = vsel %vm561, 16843009, 0
      %v578 = vsel %vm562, 16843009, 0
      %v579 = vunpack.c.0.s8 %v563
      %v580 = vunpack.c.1.s8 %v563
      %v581 = vunpack.c.0.s8 %v564
      %v582 = vunpack.c.1.s8 %v564
      %v583 = vunpack.c.0.s8 %v565
      %v584 = vunpack.c.1.s8 %v565
      %v585 = vunpack.c.0.s8 %v566
      %v586 = vunpack.c.1.s8 %v566
      %v587 = vunpack.c.0.s8 %v567
      %v588 = vunpack.c.1.s8 %v567
      %v589 = vunpack.c.0.s8 %v568
      %v590 = vunpack.c.1.s8 %v568
      %v591 = vunpack.c.0.s8 %v569
      %v592 = vunpack.c.1.s8 %v569
      %v593 = vunpack.c.0.s8 %v570
      %v594 = vunpack.c.1.s8 %v570
      %v595 = vunpack.c.0.s8 %v571
      %v596 = vunpack.c.1.s8 %v571
      %v597 = vunpack.c.0.s8 %v572
      %v598 = vunpack.c.1.s8 %v572
      %v599 = vunpack.c.0.s8 %v573
      %v600 = vunpack.c.1.s8 %v573
      %v601 = vunpack.c.0.s8 %v574
      %v602 = vunpack.c.1.s8 %v574
      %v603 = vunpack.c.0.s8 %v575
      %v604 = vunpack.c.1.s8 %v575
      %v605 = vunpack.c.0.s8 %v576
      %v606 = vunpack.c.1.s8 %v576
      %v607 = vunpack.c.0.s8 %v577
      %v608 = vunpack.c.1.s8 %v577
      %v609 = vunpack.c.0.s8 %v578
      %v610 = vunpack.c.1.s8 %v578
      %vm611 = vcmp.ne.s32.totalorder %v579, 0
      %vm612 = vcmp.ne.s32.totalorder %v580, 0
      %vm613 = vcmp.ne.s32.totalorder %v581, 0
      %vm614 = vcmp.ne.s32.totalorder %v582, 0
      %vm615 = vcmp.ne.s32.totalorder %v583, 0
      %vm616 = vcmp.ne.s32.totalorder %v584, 0
      %vm617 = vcmp.ne.s32.totalorder %v585, 0
      %vm618 = vcmp.ne.s32.totalorder %v586, 0
      %vm619 = vcmp.ne.s32.totalorder %v587, 0
      %vm620 = vcmp.ne.s32.totalorder %v588, 0
      %vm621 = vcmp.ne.s32.totalorder %v589, 0
      %vm622 = vcmp.ne.s32.totalorder %v590, 0
      %vm623 = vcmp.ne.s32.totalorder %v591, 0
      %vm624 = vcmp.ne.s32.totalorder %v592, 0
      %vm625 = vcmp.ne.s32.totalorder %v593, 0
      %vm626 = vcmp.ne.s32.totalorder %v594, 0
      %vm627 = vcmp.ne.s32.totalorder %v595, 0
      %vm628 = vcmp.ne.s32.totalorder %v596, 0
      %vm629 = vcmp.ne.s32.totalorder %v597, 0
      %vm630 = vcmp.ne.s32.totalorder %v598, 0
      %vm631 = vcmp.ne.s32.totalorder %v599, 0
      %vm632 = vcmp.ne.s32.totalorder %v600, 0
      %vm633 = vcmp.ne.s32.totalorder %v601, 0
      %vm634 = vcmp.ne.s32.totalorder %v602, 0
      %vm635 = vcmp.ne.s32.totalorder %v603, 0
      %vm636 = vcmp.ne.s32.totalorder %v604, 0
      %vm637 = vcmp.ne.s32.totalorder %v605, 0
      %vm638 = vcmp.ne.s32.totalorder %v606, 0
      %vm639 = vcmp.ne.s32.totalorder %v607, 0
      %vm640 = vcmp.ne.s32.totalorder %v608, 0
      %vm641 = vcmp.ne.s32.totalorder %v609, 0
      %vm642 = vcmp.ne.s32.totalorder %v610, 0
      %v643 = vsel %vm611, %v421, %v471
      %v644 = vsel %vm612, %v422, %v472
      %v645 = vsel %vm613, %v423, %v471
      %v646 = vsel %vm614, %v424, %v472
      %v647 = vsel %vm615, %v425, %v471
      %v648 = vsel %vm616, %v426, %v472
      %v649 = vsel %vm617, %v427, %v471
      %v650 = vsel %vm618, %v428, %v472
      %v651 = vsel %vm619, %v429, %v471
      %v652 = vsel %vm620, %v430, %v472
      %v653 = vsel %vm621, %v431, %v471
      %v654 = vsel %vm622, %v432, %v472
      %v655 = vsel %vm623, %v433, %v471
      %v656 = vsel %vm624, %v434, %v472
      %v657 = vsel %vm625, %v435, %v471
      %v658 = vsel %vm626, %v436, %v472
      %v659 = vsel %vm627, %v437, %v471
      %v660 = vsel %vm628, %v438, %v472
      %v661 = vsel %vm629, %v439, %v471
      %v662 = vsel %vm630, %v440, %v472
      %v663 = vsel %vm631, %v441, %v471
      %v664 = vsel %vm632, %v442, %v472
      %v665 = vsel %vm633, %v443, %v471
      %v666 = vsel %vm634, %v444, %v472
      %v667 = vsel %vm635, %v445, %v471
      %v668 = vsel %vm636, %v446, %v472
      %v669 = vsel %vm637, %v447, %v471
      %v670 = vsel %vm638, %v448, %v472
      %v671 = vsel %vm639, %v449, %v471
      %v672 = vsel %vm640, %v450, %v472
      %v673 = vsel %vm641, %v451, %v471
      %v674 = vsel %vm642, %v452, %v472
      %v675 = vmax.f32 %v643, %v644
      %676 = vmax.xlane.f32.xlu0 %v675
      %v677 = vpop.xlane.xlu0 %676
      %v678 = vmax.f32 %v645, %v646
      %679 = vmax.xlane.f32.xlu0 %v678
      %v680 = vpop.xlane.xlu0 %679
      %v681 = vmax.f32 %v647, %v648
      %682 = vmax.xlane.f32.xlu0 %v681
      %v683 = vpop.xlane.xlu0 %682
      %v684 = vmax.f32 %v649, %v650
      %685 = vmax.xlane.f32.xlu0 %v684
      %v686 = vpop.xlane.xlu0 %685
      %v687 = vmax.f32 %v651, %v652
      %688 = vmax.xlane.f32.xlu0 %v687
      %v689 = vpop.xlane.xlu0 %688
      %v690 = vmax.f32 %v653, %v654
      %691 = vmax.xlane.f32.xlu0 %v690
      %v692 = vpop.xlane.xlu0 %691
      %v693 = vmax.f32 %v655, %v656
      %694 = vmax.xlane.f32.xlu0 %v693
      %v695 = vpop.xlane.xlu0 %694
      %v696 = vmax.f32 %v657, %v658
      %697 = vmax.xlane.f32.xlu0 %v696
      %v698 = vpop.xlane.xlu0 %697
      %v699 = vmax.f32 %v659, %v660
      %700 = vmax.xlane.f32.xlu0 %v699
      %v701 = vpop.xlane.xlu0 %700
      %v702 = vmax.f32 %v661, %v662
      %703 = vmax.xlane.f32.xlu0 %v702
      %v704 = vpop.xlane.xlu0 %703
      %v705 = vmax.f32 %v663, %v664
      %706 = vmax.xlane.f32.xlu0 %v705
      %v707 = vpop.xlane.xlu0 %706
      %v708 = vmax.f32 %v665, %v666
      %709 = vmax.xlane.f32.xlu0 %v708
      %v710 = vpop.xlane.xlu0 %709
      %v711 = vmax.f32 %v667, %v668
      %712 = vmax.xlane.f32.xlu0 %v711
      %v713 = vpop.xlane.xlu0 %712
      %v714 = vmax.f32 %v669, %v670
      %715 = vmax.xlane.f32.xlu0 %v714
      %v716 = vpop.xlane.xlu0 %715
      %v717 = vmax.f32 %v671, %v672
      %718 = vmax.xlane.f32.xlu0 %v717
      %v719 = vpop.xlane.xlu0 %718
      %v720 = vmax.f32 %v673, %v674
      %721 = vmax.xlane.f32.xlu0 %v720
      %v722 = vpop.xlane.xlu0 %721
      %v723 = vsub.f32 %v643, %v677
      %v724 = vsub.f32 %v644, %v677
      %v725 = vsub.f32 %v645, %v680
      %v726 = vsub.f32 %v646, %v680
      %v727 = vsub.f32 %v647, %v683
      %v728 = vsub.f32 %v648, %v683
      %v729 = vsub.f32 %v649, %v686
      %v730 = vsub.f32 %v650, %v686
      %v731 = vsub.f32 %v651, %v689
      %v732 = vsub.f32 %v652, %v689
      %v733 = vsub.f32 %v653, %v692
      %v734 = vsub.f32 %v654, %v692
      %v735 = vsub.f32 %v655, %v695
      %v736 = vsub.f32 %v656, %v695
      %v737 = vsub.f32 %v657, %v698
      %v738 = vsub.f32 %v658, %v698
      %v739 = vsub.f32 %v659, %v701
      %v740 = vsub.f32 %v660, %v701
      %v741 = vsub.f32 %v661, %v704
      %v742 = vsub.f32 %v662, %v704
      %v743 = vsub.f32 %v663, %v707
      %v744 = vsub.f32 %v664, %v707
      %v745 = vsub.f32 %v665, %v710
      %v746 = vsub.f32 %v666, %v710
      %v747 = vsub.f32 %v667, %v713
      %v748 = vsub.f32 %v668, %v713
      %v749 = vsub.f32 %v669, %v716
      %v750 = vsub.f32 %v670, %v716
      %v751 = vsub.f32 %v671, %v719
      %v752 = vsub.f32 %v672, %v719
      %v753 = vsub.f32 %v673, %v722
      %v754 = vsub.f32 %v674, %v722
      %v755 = vmul.f32 %v723, 1.442695
      %v756 = vpow.pop %v755
      %v757 = vmul.f32 %v724, 1.442695
      %v758 = vpow.pop %v757
      %v759 = vmul.f32 %v725, 1.442695
      %v760 = vpow.pop %v759
      %v761 = vmul.f32 %v726, 1.442695
      %v762 = vpow.pop %v761
      %v763 = vmul.f32 %v727, 1.442695
      %v764 = vpow.pop %v763
      %v765 = vmul.f32 %v728, 1.442695
      %v766 = vpow.pop %v765
      %v767 = vmul.f32 %v729, 1.442695
      %v768 = vpow.pop %v767
      %v769 = vmul.f32 %v730, 1.442695
      %v770 = vpow.pop %v769
      %v771 = vmul.f32 %v731, 1.442695
      %v772 = vpow.pop %v771
      %v773 = vmul.f32 %v732, 1.442695
      %v774 = vpow.pop %v773
      %v775 = vmul.f32 %v733, 1.442695
      %v776 = vpow.pop %v775
      %v777 = vmul.f32 %v734, 1.442695
      %v778 = vpow.pop %v777
      %v779 = vmul.f32 %v735, 1.442695
      %v780 = vpow.pop %v779
      %v781 = vmul.f32 %v736, 1.442695
      %v782 = vpow.pop %v781
      %v783 = vmul.f32 %v737, 1.442695
      %v784 = vpow.pop %v783
      %v785 = vmul.f32 %v738, 1.442695
      %v786 = vpow.pop %v785
      %v787 = vmul.f32 %v739, 1.442695
      %v788 = vpow.pop %v787
      %v789 = vmul.f32 %v740, 1.442695
      %v790 = vpow.pop %v789
      %v791 = vmul.f32 %v741, 1.442695
      %v792 = vpow.pop %v791
      %v793 = vmul.f32 %v742, 1.442695
      %v794 = vpow.pop %v793
      %v795 = vmul.f32 %v743, 1.442695
      %v796 = vpow.pop %v795
      %v797 = vmul.f32 %v744, 1.442695
      %v798 = vpow.pop %v797
      %v799 = vmul.f32 %v745, 1.442695
      %v800 = vpow.pop %v799
      %v801 = vmul.f32 %v746, 1.442695
      %v802 = vpow.pop %v801
      %v803 = vmul.f32 %v747, 1.442695
      %v804 = vpow.pop %v803
      %v805 = vmul.f32 %v748, 1.442695
      %v806 = vpow.pop %v805
      %v807 = vmul.f32 %v749, 1.442695
      %v808 = vpow.pop %v807
      %v809 = vmul.f32 %v750, 1.442695
      %v810 = vpow.pop %v809
      %v811 = vmul.f32 %v751, 1.442695
      %v812 = vpow.pop %v811
      %v813 = vmul.f32 %v752, 1.442695
      %v814 = vpow.pop %v813
      %v815 = vmul.f32 %v753, 1.442695
      %v816 = vpow.pop %v815
      %v817 = vmul.f32 %v754, 1.442695
      %v818 = vpow.pop %v817
      %v819 = vadd.f32 %v756, %v758
      %820 = vadd.xlane.f32.xlu0 %v819
      %v821 = vpop.xlane.xlu0 %820
      %v822 = vadd.f32 %v760, %v762
      %823 = vadd.xlane.f32.xlu0 %v822
      %v824 = vpop.xlane.xlu0 %823
      %v825 = vadd.f32 %v764, %v766
      %826 = vadd.xlane.f32.xlu0 %v825
      %v827 = vpop.xlane.xlu0 %826
      %v828 = vadd.f32 %v768, %v770
      %829 = vadd.xlane.f32.xlu0 %v828
      %v830 = vpop.xlane.xlu0 %829
      %v831 = vadd.f32 %v772, %v774
      %832 = vadd.xlane.f32.xlu0 %v831
      %v833 = vpop.xlane.xlu0 %832
      %v834 = vadd.f32 %v776, %v778
      %835 = vadd.xlane.f32.xlu0 %v834
      %v836 = vpop.xlane.xlu0 %835
      %v837 = vadd.f32 %v780, %v782
      %838 = vadd.xlane.f32.xlu0 %v837
      %v839 = vpop.xlane.xlu0 %838
      %v840 = vadd.f32 %v784, %v786
      %841 = vadd.xlane.f32.xlu0 %v840
      %v842 = vpop.xlane.xlu0 %841
      %v843 = vadd.f32 %v788, %v790
      %844 = vadd.xlane.f32.xlu0 %v843
      %v845 = vpop.xlane.xlu0 %844
      %v846 = vadd.f32 %v792, %v794
      %847 = vadd.xlane.f32.xlu0 %v846
      %v848 = vpop.xlane.xlu0 %847
      %v849 = vadd.f32 %v796, %v798
      %850 = vadd.xlane.f32.xlu0 %v849
      %v851 = vpop.xlane.xlu0 %850
      %v852 = vadd.f32 %v800, %v802
      %853 = vadd.xlane.f32.xlu0 %v852
      %v854 = vpop.xlane.xlu0 %853
      %v855 = vadd.f32 %v804, %v806
      %856 = vadd.xlane.f32.xlu0 %v855
      %v857 = vpop.xlane.xlu0 %856
      %v858 = vadd.f32 %v808, %v810
      %859 = vadd.xlane.f32.xlu0 %v858
      %v860 = vpop.xlane.xlu0 %859
      %v861 = vadd.f32 %v812, %v814
      %862 = vadd.xlane.f32.xlu0 %v861
      %v863 = vpop.xlane.xlu0 %862
      %v864 = vadd.f32 %v816, %v818
      %865 = vadd.xlane.f32.xlu0 %v864
      %v866 = vpop.xlane.xlu0 %865
      %v867 = vld [vmem:[%s4] sm:$0xff]
      %v868 = vld [vmem:[%s4 + $0x8] sm:$0xff]
      %v869 = vld [vmem:[%s4 + $0x10] sm:$0xff]
      %v870 = vld [vmem:[%s4 + $0x18] sm:$0xff]
      %v871 = vld [vmem:[%s4 + $0x20] sm:$0xff]
      %v872 = vld [vmem:[%s4 + $0x28] sm:$0xff]
      %v873 = vld [vmem:[%s4 + $0x30] sm:$0xff]
      %v874 = vld [vmem:[%s4 + $0x38] sm:$0xff]
      %v875 = vld [vmem:[%s4 + $0x40] sm:$0xff]
      %v876 = vld [vmem:[%s4 + $0x48] sm:$0xff]
      %v877 = vld [vmem:[%s4 + $0x50] sm:$0xff]
      %v878 = vld [vmem:[%s4 + $0x58] sm:$0xff]
      %v879 = vld [vmem:[%s4 + $0x60] sm:$0xff]
      %v880 = vld [vmem:[%s4 + $0x68] sm:$0xff]
      %v881 = vld [vmem:[%s4 + $0x70] sm:$0xff]
      %v882 = vld [vmem:[%s4 + $0x78] sm:$0xff]
      %v883 = vld [vmem:[%s4 + $0x80] sm:$0xff]
      %v884 = vld [vmem:[%s4 + $0x88] sm:$0xff]
      %v885 = vld [vmem:[%s4 + $0x90] sm:$0xff]
      %v886 = vld [vmem:[%s4 + $0x98] sm:$0xff]
      %v887 = vld [vmem:[%s4 + $0xa0] sm:$0xff]
      %v888 = vld [vmem:[%s4 + $0xa8] sm:$0xff]
      %v889 = vld [vmem:[%s4 + $0xb0] sm:$0xff]
      %v890 = vld [vmem:[%s4 + $0xb8] sm:$0xff]
      %v891 = vld [vmem:[%s4 + $0xc0] sm:$0xff]
      %v892 = vld [vmem:[%s4 + $0xc8] sm:$0xff]
      %v893 = vld [vmem:[%s4 + $0xd0] sm:$0xff]
      %v894 = vld [vmem:[%s4 + $0xd8] sm:$0xff]
      %v895 = vld [vmem:[%s4 + $0xe0] sm:$0xff]
      %v896 = vld [vmem:[%s4 + $0xe8] sm:$0xff]
      %v897 = vld [vmem:[%s4 + $0xf0] sm:$0xff]
      %v898 = vld [vmem:[%s4 + $0xf8] sm:$0xff]
      %899 = vmatpush.msra.mxu0 %v882
      %900 = vmatpush.msra.mxu0 %v881
      %901 = vmatpush.msra.mxu0 %v880
      %902 = vmatpush.msra.mxu0 %v879
      %903 = vmatpush.msra.mxu0 %v878
      %904 = vmatpush.msra.mxu0 %v877
      %905 = vmatpush.msra.mxu0 %v876
      %906 = vmatpush.msra.mxu0 %v875
      %907 = vmatpush.msra.mxu0 %v874
      %908 = vmatpush.msra.mxu0 %v873
      %909 = vmatpush.msra.mxu0 %v872
      %910 = vmatpush.msra.mxu0 %v871
      %911 = vmatpush.msra.mxu0 %v870
      %912 = vmatpush.msra.mxu0 %v869
      %913 = vmatpush.msra.mxu0 %v868
      %914 = vmatpush.msra.mxu0 %v867
      %915 = vmatmul.f32.gmra.mxu0 %v756
      %v916 = vpop.f32.mrf.mxu0
      %v917 = vadd.f32 0.0, %v916
      %918 = vmatmul.f32.gmra.mxu0 %v760
      %v919 = vpop.f32.mrf.mxu0
      %v920 = vadd.f32 0.0, %v919
      %921 = vmatmul.f32.gmra.mxu0 %v764
      %v922 = vpop.f32.mrf.mxu0
      %v923 = vadd.f32 0.0, %v922
      %924 = vmatmul.f32.gmra.mxu0 %v768
      %v925 = vpop.f32.mrf.mxu0
      %v926 = vadd.f32 0.0, %v925
      %927 = vmatmul.f32.gmra.mxu0 %v772
      %v928 = vpop.f32.mrf.mxu0
      %v929 = vadd.f32 0.0, %v928
      %930 = vmatmul.f32.gmra.mxu0 %v776
      %v931 = vpop.f32.mrf.mxu0
      %v932 = vadd.f32 0.0, %v931
      %933 = vmatmul.f32.gmra.mxu0 %v780
      %v934 = vpop.f32.mrf.mxu0
      %v935 = vadd.f32 0.0, %v934
      %936 = vmatmul.f32.gmra.mxu0 %v784
      %v937 = vpop.f32.mrf.mxu0
      %v938 = vadd.f32 0.0, %v937
      %939 = vmatmul.f32.gmra.mxu0 %v788
      %v940 = vpop.f32.mrf.mxu0
      %v941 = vadd.f32 0.0, %v940
      %942 = vmatmul.f32.gmra.mxu0 %v792
      %v943 = vpop.f32.mrf.mxu0
      %v944 = vadd.f32 0.0, %v943
      %945 = vmatmul.f32.gmra.mxu0 %v796
      %v946 = vpop.f32.mrf.mxu0
      %v947 = vadd.f32 0.0, %v946
      %948 = vmatmul.f32.gmra.mxu0 %v800
      %v949 = vpop.f32.mrf.mxu0
      %v950 = vadd.f32 0.0, %v949
      %951 = vmatmul.f32.gmra.mxu0 %v804
      %v952 = vpop.f32.mrf.mxu0
      %v953 = vadd.f32 0.0, %v952
      %954 = vmatmul.f32.gmra.mxu0 %v808
      %v955 = vpop.f32.mrf.mxu0
      %v956 = vadd.f32 0.0, %v955
      %957 = vmatmul.f32.gmra.mxu0 %v812
      %v958 = vpop.f32.mrf.mxu0
      %v959 = vadd.f32 0.0, %v958
      %960 = vmatmul.f32.gmra.mxu0 %v816
      %v961 = vpop.f32.mrf.mxu0
      %v962 = vadd.f32 0.0, %v961
      %963 = vdwg.mxu0
      %964 = vmatpush.msra.mxu0 %v898
      %965 = vmatpush.msra.mxu0 %v897
      %966 = vmatpush.msra.mxu0 %v896
      %967 = vmatpush.msra.mxu0 %v895
      %968 = vmatpush.msra.mxu0 %v894
      %969 = vmatpush.msra.mxu0 %v893
      %970 = vmatpush.msra.mxu0 %v892
      %971 = vmatpush.msra.mxu0 %v891
      %972 = vmatpush.msra.mxu0 %v890
      %973 = vmatpush.msra.mxu0 %v889
      %974 = vmatpush.msra.mxu0 %v888
      %975 = vmatpush.msra.mxu0 %v887
      %976 = vmatpush.msra.mxu0 %v886
      %977 = vmatpush.msra.mxu0 %v885
      %978 = vmatpush.msra.mxu0 %v884
      %979 = vmatpush.msra.mxu0 %v883
      %980 = vmatmul.f32.gmra.mxu0 %v758
      %v981 = vpop.f32.mrf.mxu0
      %v982 = vadd.f32 %v917, %v981
      %983 = vmatmul.f32.gmra.mxu0 %v762
      %v984 = vpop.f32.mrf.mxu0
      %v985 = vadd.f32 %v920, %v984
      %986 = vmatmul.f32.gmra.mxu0 %v766
      %v987 = vpop.f32.mrf.mxu0
      %v988 = vadd.f32 %v923, %v987
      %989 = vmatmul.f32.gmra.mxu0 %v770
      %v990 = vpop.f32.mrf.mxu0
      %v991 = vadd.f32 %v926, %v990
      %992 = vmatmul.f32.gmra.mxu0 %v774
      %v993 = vpop.f32.mrf.mxu0
      %v994 = vadd.f32 %v929, %v993
      %995 = vmatmul.f32.gmra.mxu0 %v778
      %v996 = vpop.f32.mrf.mxu0
      %v997 = vadd.f32 %v932, %v996
      %998 = vmatmul.f32.gmra.mxu0 %v782
      %v999 = vpop.f32.mrf.mxu0
      %v1000 = vadd.f32 %v935, %v999
      %1001 = vmatmul.f32.gmra.mxu0 %v786
      %v1002 = vpop.f32.mrf.mxu0
      %v1003 = vadd.f32 %v938, %v1002
      %1004 = vmatmul.f32.gmra.mxu0 %v790
      %v1005 = vpop.f32.mrf.mxu0
      %v1006 = vadd.f32 %v941, %v1005
      %1007 = vmatmul.f32.gmra.mxu0 %v794
      %v1008 = vpop.f32.mrf.mxu0
      %v1009 = vadd.f32 %v944, %v1008
      %1010 = vmatmul.f32.gmra.mxu0 %v798
      %v1011 = vpop.f32.mrf.mxu0
      %v1012 = vadd.f32 %v947, %v1011
      %1013 = vmatmul.f32.gmra.mxu0 %v802
      %v1014 = vpop.f32.mrf.mxu0
      %v1015 = vadd.f32 %v950, %v1014
      %1016 = vmatmul.f32.gmra.mxu0 %v806
      %v1017 = vpop.f32.mrf.mxu0
      %v1018 = vadd.f32 %v953, %v1017
      %1019 = vmatmul.f32.gmra.mxu0 %v810
      %v1020 = vpop.f32.mrf.mxu0
      %v1021 = vadd.f32 %v956, %v1020
      %1022 = vmatmul.f32.gmra.mxu0 %v814
      %v1023 = vpop.f32.mrf.mxu0
      %v1024 = vadd.f32 %v959, %v1023
      %1025 = vmatmul.f32.gmra.mxu0 %v818
      %v1026 = vpop.f32.mrf.mxu0
      %v1027 = vadd.f32 %v962, %v1026
      %1028 = vdwg.mxu0
      %v1029 = vrcp.pop %v821
      %v1030 = vmul.f32 %v821, %v1029
      %v1031 = vsub.f32 1.0, %v1030
      %v1032 = vmul.f32 %v1029, %v1031
      %v1033 = vadd.f32 %v1029, %v1032
      %vm1034 = vweird.f32 %v821
      %vm1035 = vweird.f32 %v1029
      %vm1036 = vmor %vm1034, %vm1035
      %v1037 = vsel %vm1036, %v1029, %v1033
      %v1038 = vand.u32 2147483647, %v821
      %vm1039 = vcmp.eq.f32.partialorder %v1038, 8.507059e+37
      %v1040 = vand.u32 %v821, 2147483648
      %v1041 = vor.u32 1.1754944e-38, %v1040
      %v1042 = vsel %vm1039, %v1041, %v1037
      %v1043 = vrcp.pop %v824
      %v1044 = vmul.f32 %v824, %v1043
      %v1045 = vsub.f32 1.0, %v1044
      %v1046 = vmul.f32 %v1043, %v1045
      %v1047 = vadd.f32 %v1043, %v1046
      %vm1048 = vweird.f32 %v824
      %vm1049 = vweird.f32 %v1043
      %vm1050 = vmor %vm1048, %vm1049
      %v1051 = vsel %vm1050, %v1043, %v1047
      %v1052 = vand.u32 2147483647, %v824
      %vm1053 = vcmp.eq.f32.partialorder %v1052, 8.507059e+37
      %v1054 = vand.u32 %v824, 2147483648
      %v1055 = vor.u32 1.1754944e-38, %v1054
      %v1056 = vsel %vm1053, %v1055, %v1051
      %v1057 = vrcp.pop %v827
      %v1058 = vmul.f32 %v827, %v1057
      %v1059 = vsub.f32 1.0, %v1058
      %v1060 = vmul.f32 %v1057, %v1059
      %v1061 = vadd.f32 %v1057, %v1060
      %vm1062 = vweird.f32 %v827
      %vm1063 = vweird.f32 %v1057
      %vm1064 = vmor %vm1062, %vm1063
      %v1065 = vsel %vm1064, %v1057, %v1061
      %v1066 = vand.u32 2147483647, %v827
      %vm1067 = vcmp.eq.f32.partialorder %v1066, 8.507059e+37
      %v1068 = vand.u32 %v827, 2147483648
      %v1069 = vor.u32 1.1754944e-38, %v1068
      %v1070 = vsel %vm1067, %v1069, %v1065
      %v1071 = vrcp.pop %v830
      %v1072 = vmul.f32 %v830, %v1071
      %v1073 = vsub.f32 1.0, %v1072
      %v1074 = vmul.f32 %v1071, %v1073
      %v1075 = vadd.f32 %v1071, %v1074
      %vm1076 = vweird.f32 %v830
      %vm1077 = vweird.f32 %v1071
      %vm1078 = vmor %vm1076, %vm1077
      %v1079 = vsel %vm1078, %v1071, %v1075
      %v1080 = vand.u32 2147483647, %v830
      %vm1081 = vcmp.eq.f32.partialorder %v1080, 8.507059e+37
      %v1082 = vand.u32 %v830, 2147483648
      %v1083 = vor.u32 1.1754944e-38, %v1082
      %v1084 = vsel %vm1081, %v1083, %v1079
      %v1085 = vrcp.pop %v833
      %v1086 = vmul.f32 %v833, %v1085
      %v1087 = vsub.f32 1.0, %v1086
      %v1088 = vmul.f32 %v1085, %v1087
      %v1089 = vadd.f32 %v1085, %v1088
      %vm1090 = vweird.f32 %v833
      %vm1091 = vweird.f32 %v1085
      %vm1092 = vmor %vm1090, %vm1091
      %v1093 = vsel %vm1092, %v1085, %v1089
      %v1094 = vand.u32 2147483647, %v833
      %vm1095 = vcmp.eq.f32.partialorder %v1094, 8.507059e+37
      %v1096 = vand.u32 %v833, 2147483648
      %v1097 = vor.u32 1.1754944e-38, %v1096
      %v1098 = vsel %vm1095, %v1097, %v1093
      %v1099 = vrcp.pop %v836
      %v1100 = vmul.f32 %v836, %v1099
      %v1101 = vsub.f32 1.0, %v1100
      %v1102 = vmul.f32 %v1099, %v1101
      %v1103 = vadd.f32 %v1099, %v1102
      %vm1104 = vweird.f32 %v836
      %vm1105 = vweird.f32 %v1099
      %vm1106 = vmor %vm1104, %vm1105
      %v1107 = vsel %vm1106, %v1099, %v1103
      %v1108 = vand.u32 2147483647, %v836
      %vm1109 = vcmp.eq.f32.partialorder %v1108, 8.507059e+37
      %v1110 = vand.u32 %v836, 2147483648
      %v1111 = vor.u32 1.1754944e-38, %v1110
      %v1112 = vsel %vm1109, %v1111, %v1107
      %v1113 = vrcp.pop %v839
      %v1114 = vmul.f32 %v839, %v1113
      %v1115 = vsub.f32 1.0, %v1114
      %v1116 = vmul.f32 %v1113, %v1115
      %v1117 = vadd.f32 %v1113, %v1116
      %vm1118 = vweird.f32 %v839
      %vm1119 = vweird.f32 %v1113
      %vm1120 = vmor %vm1118, %vm1119
      %v1121 = vsel %vm1120, %v1113, %v1117
      %v1122 = vand.u32 2147483647, %v839
      %vm1123 = vcmp.eq.f32.partialorder %v1122, 8.507059e+37
      %v1124 = vand.u32 %v839, 2147483648
      %v1125 = vor.u32 1.1754944e-38, %v1124
      %v1126 = vsel %vm1123, %v1125, %v1121
      %v1127 = vrcp.pop %v842
      %v1128 = vmul.f32 %v842, %v1127
      %v1129 = vsub.f32 1.0, %v1128
      %v1130 = vmul.f32 %v1127, %v1129
      %v1131 = vadd.f32 %v1127, %v1130
      %vm1132 = vweird.f32 %v842
      %vm1133 = vweird.f32 %v1127
      %vm1134 = vmor %vm1132, %vm1133
      %v1135 = vsel %vm1134, %v1127, %v1131
      %v1136 = vand.u32 2147483647, %v842
      %vm1137 = vcmp.eq.f32.partialorder %v1136, 8.507059e+37
      %v1138 = vand.u32 %v842, 2147483648
      %v1139 = vor.u32 1.1754944e-38, %v1138
      %v1140 = vsel %vm1137, %v1139, %v1135
      %v1141 = vrcp.pop %v845
      %v1142 = vmul.f32 %v845, %v1141
      %v1143 = vsub.f32 1.0, %v1142
      %v1144 = vmul.f32 %v1141, %v1143
      %v1145 = vadd.f32 %v1141, %v1144
      %vm1146 = vweird.f32 %v845
      %vm1147 = vweird.f32 %v1141
      %vm1148 = vmor %vm1146, %vm1147
      %v1149 = vsel %vm1148, %v1141, %v1145
      %v1150 = vand.u32 2147483647, %v845
      %vm1151 = vcmp.eq.f32.partialorder %v1150, 8.507059e+37
      %v1152 = vand.u32 %v845, 2147483648
      %v1153 = vor.u32 1.1754944e-38, %v1152
      %v1154 = vsel %vm1151, %v1153, %v1149
      %v1155 = vrcp.pop %v848
      %v1156 = vmul.f32 %v848, %v1155
      %v1157 = vsub.f32 1.0, %v1156
      %v1158 = vmul.f32 %v1155, %v1157
      %v1159 = vadd.f32 %v1155, %v1158
      %vm1160 = vweird.f32 %v848
      %vm1161 = vweird.f32 %v1155
      %vm1162 = vmor %vm1160, %vm1161
      %v1163 = vsel %vm1162, %v1155, %v1159
      %v1164 = vand.u32 2147483647, %v848
      %vm1165 = vcmp.eq.f32.partialorder %v1164, 8.507059e+37
      %v1166 = vand.u32 %v848, 2147483648
      %v1167 = vor.u32 1.1754944e-38, %v1166
      %v1168 = vsel %vm1165, %v1167, %v1163
      %v1169 = vrcp.pop %v851
      %v1170 = vmul.f32 %v851, %v1169
      %v1171 = vsub.f32 1.0, %v1170
      %v1172 = vmul.f32 %v1169, %v1171
      %v1173 = vadd.f32 %v1169, %v1172
      %vm1174 = vweird.f32 %v851
      %vm1175 = vweird.f32 %v1169
      %vm1176 = vmor %vm1174, %vm1175
      %v1177 = vsel %vm1176, %v1169, %v1173
      %v1178 = vand.u32 2147483647, %v851
      %vm1179 = vcmp.eq.f32.partialorder %v1178, 8.507059e+37
      %v1180 = vand.u32 %v851, 2147483648
      %v1181 = vor.u32 1.1754944e-38, %v1180
      %v1182 = vsel %vm1179, %v1181, %v1177
      %v1183 = vrcp.pop %v854
      %v1184 = vmul.f32 %v854, %v1183
      %v1185 = vsub.f32 1.0, %v1184
      %v1186 = vmul.f32 %v1183, %v1185
      %v1187 = vadd.f32 %v1183, %v1186
      %vm1188 = vweird.f32 %v854
      %vm1189 = vweird.f32 %v1183
      %vm1190 = vmor %vm1188, %vm1189
      %v1191 = vsel %vm1190, %v1183, %v1187
      %v1192 = vand.u32 2147483647, %v854
      %vm1193 = vcmp.eq.f32.partialorder %v1192, 8.507059e+37
      %v1194 = vand.u32 %v854, 2147483648
      %v1195 = vor.u32 1.1754944e-38, %v1194
      %v1196 = vsel %vm1193, %v1195, %v1191
      %v1197 = vrcp.pop %v857
      %v1198 = vmul.f32 %v857, %v1197
      %v1199 = vsub.f32 1.0, %v1198
      %v1200 = vmul.f32 %v1197, %v1199
      %v1201 = vadd.f32 %v1197, %v1200
      %vm1202 = vweird.f32 %v857
      %vm1203 = vweird.f32 %v1197
      %vm1204 = vmor %vm1202, %vm1203
      %v1205 = vsel %vm1204, %v1197, %v1201
      %v1206 = vand.u32 2147483647, %v857
      %vm1207 = vcmp.eq.f32.partialorder %v1206, 8.507059e+37
      %v1208 = vand.u32 %v857, 2147483648
      %v1209 = vor.u32 1.1754944e-38, %v1208
      %v1210 = vsel %vm1207, %v1209, %v1205
      %v1211 = vrcp.pop %v860
      %v1212 = vmul.f32 %v860, %v1211
      %v1213 = vsub.f32 1.0, %v1212
      %v1214 = vmul.f32 %v1211, %v1213
      %v1215 = vadd.f32 %v1211, %v1214
      %vm1216 = vweird.f32 %v860
      %vm1217 = vweird.f32 %v1211
      %vm1218 = vmor %vm1216, %vm1217
      %v1219 = vsel %vm1218, %v1211, %v1215
      %v1220 = vand.u32 2147483647, %v860
      %vm1221 = vcmp.eq.f32.partialorder %v1220, 8.507059e+37
      %v1222 = vand.u32 %v860, 2147483648
      %v1223 = vor.u32 1.1754944e-38, %v1222
      %v1224 = vsel %vm1221, %v1223, %v1219
      %v1225 = vrcp.pop %v863
      %v1226 = vmul.f32 %v863, %v1225
      %v1227 = vsub.f32 1.0, %v1226
      %v1228 = vmul.f32 %v1225, %v1227
      %v1229 = vadd.f32 %v1225, %v1228
      %vm1230 = vweird.f32 %v863
      %vm1231 = vweird.f32 %v1225
      %vm1232 = vmor %vm1230, %vm1231
      %v1233 = vsel %vm1232, %v1225, %v1229
      %v1234 = vand.u32 2147483647, %v863
      %vm1235 = vcmp.eq.f32.partialorder %v1234, 8.507059e+37
      %v1236 = vand.u32 %v863, 2147483648
      %v1237 = vor.u32 1.1754944e-38, %v1236
      %v1238 = vsel %vm1235, %v1237, %v1233
      %v1239 = vrcp.pop %v866
      %v1240 = vmul.f32 %v866, %v1239
      %v1241 = vsub.f32 1.0, %v1240
      %v1242 = vmul.f32 %v1239, %v1241
      %v1243 = vadd.f32 %v1239, %v1242
      %vm1244 = vweird.f32 %v866
      %vm1245 = vweird.f32 %v1239
      %vm1246 = vmor %vm1244, %vm1245
      %v1247 = vsel %vm1246, %v1239, %v1243
      %v1248 = vand.u32 2147483647, %v866
      %vm1249 = vcmp.eq.f32.partialorder %v1248, 8.507059e+37
      %v1250 = vand.u32 %v866, 2147483648
      %v1251 = vor.u32 1.1754944e-38, %v1250
      %v1252 = vsel %vm1249, %v1251, %v1247
      %v1253 = vmul.f32 %v982, %v1042
      %v1254 = vmul.f32 %v985, %v1056
      %v1255 = vmul.f32 %v988, %v1070
      %v1256 = vmul.f32 %v991, %v1084
      %v1257 = vmul.f32 %v994, %v1098
      %v1258 = vmul.f32 %v997, %v1112
      %v1259 = vmul.f32 %v1000, %v1126
      %v1260 = vmul.f32 %v1003, %v1140
      %v1261 = vmul.f32 %v1006, %v1154
      %v1262 = vmul.f32 %v1009, %v1168
      %v1263 = vmul.f32 %v1012, %v1182
      %v1264 = vmul.f32 %v1015, %v1196
      %v1265 = vmul.f32 %v1018, %v1210
      %v1266 = vmul.f32 %v1021, %v1224
      %v1267 = vmul.f32 %v1024, %v1238
      %v1268 = vmul.f32 %v1027, %v1252
      %vm1269 = vcmp.gt.f32.partialorder %v1253, 0.0
      %vm1270 = vcmp.gt.f32.partialorder %v1254, 0.0
      %vm1271 = vcmp.gt.f32.partialorder %v1255, 0.0
      %vm1272 = vcmp.gt.f32.partialorder %v1256, 0.0
      %vm1273 = vcmp.gt.f32.partialorder %v1257, 0.0
      %vm1274 = vcmp.gt.f32.partialorder %v1258, 0.0
      %vm1275 = vcmp.gt.f32.partialorder %v1259, 0.0
      %vm1276 = vcmp.gt.f32.partialorder %v1260, 0.0
      %vm1277 = vcmp.gt.f32.partialorder %v1261, 0.0
      %vm1278 = vcmp.gt.f32.partialorder %v1262, 0.0
      %vm1279 = vcmp.gt.f32.partialorder %v1263, 0.0
      %vm1280 = vcmp.gt.f32.partialorder %v1264, 0.0
      %vm1281 = vcmp.gt.f32.partialorder %v1265, 0.0
      %vm1282 = vcmp.gt.f32.partialorder %v1266, 0.0
      %vm1283 = vcmp.gt.f32.partialorder %v1267, 0.0
      %vm1284 = vcmp.gt.f32.partialorder %v1268, 0.0
      %v1285 = vmin.f32 %v1253, 0.0
      %v1286 = vmin.f32 %v1254, 0.0
      %v1287 = vmin.f32 %v1255, 0.0
      %v1288 = vmin.f32 %v1256, 0.0
      %v1289 = vmin.f32 %v1257, 0.0
      %v1290 = vmin.f32 %v1258, 0.0
      %v1291 = vmin.f32 %v1259, 0.0
      %v1292 = vmin.f32 %v1260, 0.0
      %v1293 = vmin.f32 %v1261, 0.0
      %v1294 = vmin.f32 %v1262, 0.0
      %v1295 = vmin.f32 %v1263, 0.0
      %v1296 = vmin.f32 %v1264, 0.0
      %v1297 = vmin.f32 %v1265, 0.0
      %v1298 = vmin.f32 %v1266, 0.0
      %v1299 = vmin.f32 %v1267, 0.0
      %v1300 = vmin.f32 %v1268, 0.0
      %v1301 = vmul.f32 %v1285, 1.442695
      %v1302 = vpow.pop %v1301
      %v1303 = vmul.f32 %v1286, 1.442695
      %v1304 = vpow.pop %v1303
      %v1305 = vmul.f32 %v1287, 1.442695
      %v1306 = vpow.pop %v1305
      %v1307 = vmul.f32 %v1288, 1.442695
      %v1308 = vpow.pop %v1307
      %v1309 = vmul.f32 %v1289, 1.442695
      %v1310 = vpow.pop %v1309
      %v1311 = vmul.f32 %v1290, 1.442695
      %v1312 = vpow.pop %v1311
      %v1313 = vmul.f32 %v1291, 1.442695
      %v1314 = vpow.pop %v1313
      %v1315 = vmul.f32 %v1292, 1.442695
      %v1316 = vpow.pop %v1315
      %v1317 = vmul.f32 %v1293, 1.442695
      %v1318 = vpow.pop %v1317
      %v1319 = vmul.f32 %v1294, 1.442695
      %v1320 = vpow.pop %v1319
      %v1321 = vmul.f32 %v1295, 1.442695
      %v1322 = vpow.pop %v1321
      %v1323 = vmul.f32 %v1296, 1.442695
      %v1324 = vpow.pop %v1323
      %v1325 = vmul.f32 %v1297, 1.442695
      %v1326 = vpow.pop %v1325
      %v1327 = vmul.f32 %v1298, 1.442695
      %v1328 = vpow.pop %v1327
      %v1329 = vmul.f32 %v1299, 1.442695
      %v1330 = vpow.pop %v1329
      %v1331 = vmul.f32 %v1300, 1.442695
      %v1332 = vpow.pop %v1331
      %v1333 = vsub.f32 %v1302, 1.0
      %v1334 = vsub.f32 %v1304, 1.0
      %v1335 = vsub.f32 %v1306, 1.0
      %v1336 = vsub.f32 %v1308, 1.0
      %v1337 = vsub.f32 %v1310, 1.0
      %v1338 = vsub.f32 %v1312, 1.0
      %v1339 = vsub.f32 %v1314, 1.0
      %v1340 = vsub.f32 %v1316, 1.0
      %v1341 = vsub.f32 %v1318, 1.0
      %v1342 = vsub.f32 %v1320, 1.0
      %v1343 = vsub.f32 %v1322, 1.0
      %v1344 = vsub.f32 %v1324, 1.0
      %v1345 = vsub.f32 %v1326, 1.0
      %v1346 = vsub.f32 %v1328, 1.0
      %v1347 = vsub.f32 %v1330, 1.0
      %v1348 = vsub.f32 %v1332, 1.0
      %v1349 = vsel %vm1269, %v1253, %v1333
      %v1350 = vsel %vm1270, %v1254, %v1334
      %v1351 = vsel %vm1271, %v1255, %v1335
      %v1352 = vsel %vm1272, %v1256, %v1336
      %v1353 = vsel %vm1273, %v1257, %v1337
      %v1354 = vsel %vm1274, %v1258, %v1338
      %v1355 = vsel %vm1275, %v1259, %v1339
      %v1356 = vsel %vm1276, %v1260, %v1340
      %v1357 = vsel %vm1277, %v1261, %v1341
      %v1358 = vsel %vm1278, %v1262, %v1342
      %v1359 = vsel %vm1279, %v1263, %v1343
      %v1360 = vsel %vm1280, %v1264, %v1344
      %v1361 = vsel %vm1281, %v1265, %v1345
      %v1362 = vsel %vm1282, %v1266, %v1346
      %v1363 = vsel %vm1283, %v1267, %v1347
      %v1364 = vsel %vm1284, %v1268, %v1348
      %1365 = vst [vmem:[%s251] sm:$0xff] %v1349
      %1366 = vst [vmem:[%s251 + $0x8] sm:$0xff] %v1350
      %1367 = vst [vmem:[%s251 + $0x10] sm:$0xff] %v1351
      %1368 = vst [vmem:[%s251 + $0x18] sm:$0xff] %v1352
      %1369 = vst [vmem:[%s251 + $0x20] sm:$0xff] %v1353
      %1370 = vst [vmem:[%s251 + $0x28] sm:$0xff] %v1354
      %1371 = vst [vmem:[%s251 + $0x30] sm:$0xff] %v1355
      %1372 = vst [vmem:[%s251 + $0x38] sm:$0xff] %v1356
      %1373 = vst [vmem:[%s251 + $0x40] sm:$0xff] %v1357
      %1374 = vst [vmem:[%s251 + $0x48] sm:$0xff] %v1358
      %1375 = vst [vmem:[%s251 + $0x50] sm:$0xff] %v1359
      %1376 = vst [vmem:[%s251 + $0x58] sm:$0xff] %v1360
      %1377 = vst [vmem:[%s251 + $0x60] sm:$0xff] %v1361
      %1378 = vst [vmem:[%s251 + $0x68] sm:$0xff] %v1362
      %1379 = vst [vmem:[%s251 + $0x70] sm:$0xff] %v1363
      %1380 = vst [vmem:[%s251 + $0x78] sm:$0xff] %v1364
      %s1381 = smul.u32 16, %s16
      %p1382 = scmp.lt.s32.totalorder %s1381, 31
      %s1383 = scalar_select %p1382, %s1381, 31
      %s1384 = smul.addr %s1383, 8
      %s1385 = scalar_lea.vmem %s5, %s1384
      // Predicated region
      $region41: #{own_gat_conv_forward.3} parent=39 // pred_check
        %p1386 = pneg %p149
      $region42: #{own_gat_conv_forward.3} parent=39 // pred_check_branch
        %1388 = sbr.rel (%p1386) target = $region44
      $region43: #{own_gat_conv_forward.3} parent=39 // pred_region
        %s1389 = smul.u32 16, %s16
      $region44: #{own_gat_conv_forward.3} parent=39 // pred_fallthru
        _
    $region40: #{own_gat_conv_forward.3} parent=5 // pred_fallthru
      _
    %p1390 = scmp.le.s32.totalorder 2, %s11
    // Predicated region
    $region45: #{own_gat_conv_forward.3} parent=5 // pred_check
      %p1391 = pneg %p1390
    $region46: #{own_gat_conv_forward.3} parent=5 // pred_check_branch
      %1393 = sbr.rel (%p1391) target = $region48
    $region47: #{own_gat_conv_forward.3} parent=5 // pred_region
      %s1394 = ssub.s32 %s11, 2
      // Predicated region
      $region49: #{own_gat_conv_forward.3} parent=47 // pred_check
        %p1395 = pneg %p155
      $region50: #{own_gat_conv_forward.3} parent=47 // pred_check_branch
        %1397 = sbr.rel (%p1395) target = $region52
      $region51: #{own_gat_conv_forward.3} parent=47 // pred_region
        %s1398 = smul.u32 16, %s17
        %p1399 = scmp.lt.s32.totalorder %s1398, 31
        %s1400 = scalar_select %p1399, %s1398, 31
        %s1401 = smul.addr %s1400, 8
        %s1402 = scalar_lea.vmem %s5, %s1401
      $region52: #{own_gat_conv_forward.3} parent=47 // pred_fallthru
        _
    $region48: #{own_gat_conv_forward.3} parent=5 // pred_fallthru
      _
  $region6: #{own_gat_conv_forward.3} parent=0 // loop_footer
    %s15 = sadd.s32 1, %s11
  $region7: #{own_gat_conv_forward.3} parent=0 // loop_footer_branch
    %10 = sbr.rel target = $region3
  $region8: #{own_gat_conv_forward.3} parent=0 // loop_exit
    _

</llo_original>
